<compile_context>
chip_gen: v7x
topology: tpu7x:2x2x1
jax: 0.10.0
libtpu: 0.0.40
codegen_flags: <defaults>
</compile_context>

<pallas_src>
import jax
import jax.numpy as jnp
from jax.experimental import pallas as pl
from jax.experimental.pallas import tpu as pltpu

C = 256          # seed / vote feature channels (VotingModule(vote_factor, 256))
BN_EPS = 1e-5
TM = 256         # row tile (rows = flattened B*N points)


def _vote_kernel(xyz_ref, feat_ref,
                 w1_ref, b1_ref, w2_ref, b2_ref,
                 wx_ref, bx_ref, wf_ref, bf_ref,
                 vote_xyz_ref, vote_feat_ref):
    """One TM-row tile of flattened points per grid step. Matmuls on the MXU."""
    x = feat_ref[...]                                   # (TM, C)  f32 seed features
    xb = x.astype(jnp.bfloat16)

    # conv1 (1x1) + folded eval-mode BN1 + ReLU
    h = jnp.dot(xb, w1_ref[...], preferred_element_type=jnp.float32) + b1_ref[...]
    h = jnp.maximum(h, 0.0)

    # conv2 (1x1) + folded eval-mode BN2 + ReLU
    h = jnp.dot(h.astype(jnp.bfloat16), w2_ref[...],
                preferred_element_type=jnp.float32) + b2_ref[...]
    h = jnp.maximum(h, 0.0)
    hb = h.astype(jnp.bfloat16)

    # conv3 (1x1): xyz-offset head (3) and feature-residual head (C)
    offset = jnp.dot(hb, wx_ref[...], preferred_element_type=jnp.float32) + bx_ref[...]
    resid = jnp.dot(hb, wf_ref[...], preferred_element_type=jnp.float32) + bf_ref[...]

    # vote_xyz = seed_xyz + offset
    vote_xyz_ref[...] = xyz_ref[...] + offset           # (TM, 3)

    # vote_features = seed_features + residual, then JointNet's L2 norm over
    # channels (torch.norm(features, p=2, dim=1); div -- no epsilon).
    vf = x + resid                                      # (TM, C) f32
    inv = jax.lax.rsqrt(jnp.sum(vf * vf, axis=-1, keepdims=True))
    vote_feat_ref[...] = vf * inv


def jointnet_vote_core(seed_xyz, seed_features, params, *, tile_rows=TM):
    """Fused VotingModule + L2-normalize.

    seed_xyz:      (B, N, 3)  f32
    seed_features: (B, N, C)  f32 channel-last (== PyTorch (B, C, N) transposed;
                   kept channel-last end-to-end so no layout transposes are
                   needed around the kernel).
    Returns vote_xyz (B, N, 3) and vote_features (B, N, C), channel-last.
    """
    B, N, _ = seed_xyz.shape
    R = B * N
    xyz_flat = seed_xyz.reshape(R, 3)
    feat_flat = seed_features.reshape(R, C)

    # Pad row count to a multiple of the tile (no-op when already aligned).
    Rp = ((R + tile_rows - 1) // tile_rows) * tile_rows
    if Rp != R:
        xyz_flat = jnp.pad(xyz_flat, ((0, Rp - R), (0, 0)))
        feat_flat = jnp.pad(feat_flat, ((0, Rp - R), (0, 0)))

    w1, b1, w2, b2, wx, bx, wf, bf = params

    out_xyz, out_feat = pl.pallas_call(
        _vote_kernel,
        out_shape=(jax.ShapeDtypeStruct((Rp, 3), jnp.float32),
                   jax.ShapeDtypeStruct((Rp, C), jnp.float32)),
        grid_spec=pltpu.PrefetchScalarGridSpec(
            num_scalar_prefetch=0,
            grid=(Rp // tile_rows,),
            in_specs=[
                pl.BlockSpec((tile_rows, 3), lambda i: (i, 0)),   # seed_xyz rows
                pl.BlockSpec((tile_rows, C), lambda i: (i, 0)),   # seed_feat rows
                pl.BlockSpec((C, C), lambda i: (0, 0)),           # W1 (bf16)
                pl.BlockSpec((1, C), lambda i: (0, 0)),           # b1 (f32)
                pl.BlockSpec((C, C), lambda i: (0, 0)),           # W2 (bf16)
                pl.BlockSpec((1, C), lambda i: (0, 0)),           # b2 (f32)
                pl.BlockSpec((C, 3), lambda i: (0, 0)),           # W3 xyz head
                pl.BlockSpec((1, 3), lambda i: (0, 0)),           # b3 xyz head
                pl.BlockSpec((C, C), lambda i: (0, 0)),           # W3 feat head
                pl.BlockSpec((1, C), lambda i: (0, 0)),           # b3 feat head
            ],
            out_specs=[
                pl.BlockSpec((tile_rows, 3), lambda i: (i, 0)),
                pl.BlockSpec((tile_rows, C), lambda i: (i, 0)),
            ],
        ),
        compiler_params=pltpu.CompilerParams(
            dimension_semantics=("parallel",)),
    )(xyz_flat, feat_flat, w1, b1, w2, b2, wx, bx, wf, bf)

    vote_xyz = out_xyz[:R].reshape(B, N, 3)
    vote_feat = out_feat[:R].reshape(B, N, C)
    return vote_xyz, vote_feat


def _fold_bn(w, b, gamma, beta, mean, var):
    """Fold eval-mode BatchNorm1d into a 1x1 conv.  w: (Cout, Cin), b: (Cout,)."""
    scale = gamma / jnp.sqrt(var + BN_EPS)
    return w * scale[:, None], (b - mean) * scale + beta


def make_params(key):
    """Deterministic synthetic VotingModule parameters (kernel layout).

    Weights are stored bf16, (Cin, Cout) for x @ W; biases f32, (1, Cout).
    """
    ks = jax.random.split(key, 12)
    s = 0.05
    w1 = jax.random.normal(ks[0], (C, C), jnp.float32) * s
    b1 = jax.random.normal(ks[1], (C,), jnp.float32) * s
    g1 = 1.0 + 0.1 * jax.random.normal(ks[2], (C,), jnp.float32)
    be1 = 0.1 * jax.random.normal(ks[3], (C,), jnp.float32)
    m1 = 0.1 * jax.random.normal(ks[4], (C,), jnp.float32)
    v1 = jnp.abs(jax.random.normal(ks[5], (C,), jnp.float32)) + 0.5

    w2 = jax.random.normal(ks[6], (C, C), jnp.float32) * s
    b2 = jax.random.normal(ks[7], (C,), jnp.float32) * s
    g2 = 1.0 + 0.1 * jax.random.normal(ks[8], (C,), jnp.float32)
    be2 = 0.1 * jax.random.normal(ks[9], (C,), jnp.float32)
    m2 = 0.1 * jax.random.normal(ks[10], (C,), jnp.float32)
    v2 = jnp.abs(jax.random.normal(ks[11], (C,), jnp.float32)) + 0.5

    k3 = jax.random.split(jax.random.fold_in(key, 99), 2)
    w3 = jax.random.normal(k3[0], (3 + C, C), jnp.float32) * s    # conv3 weight
    b3 = jax.random.normal(k3[1], (3 + C,), jnp.float32) * s

    w1f, b1f = _fold_bn(w1, b1, g1, be1, m1, v1)
    w2f, b2f = _fold_bn(w2, b2, g2, be2, m2, v2)

    params = (
        w1f.T.astype(jnp.bfloat16), b1f[None, :],
        w2f.T.astype(jnp.bfloat16), b2f[None, :],
        w3[:3, :].T.astype(jnp.bfloat16), b3[None, :3],     # xyz-offset head
        w3[3:, :].T.astype(jnp.bfloat16), b3[None, 3:],     # feature-residual head
    )
    return params


def reference(seed_xyz, seed_feat, params):
    """Pure-JAX reference of the same math / same precisions."""
    w1, b1, w2, b2, wx, bx, wf, bf = params
    x = seed_feat                                                      # (B, N, C)
    h = jnp.maximum(jnp.dot(x.astype(jnp.bfloat16), w1,
                            preferred_element_type=jnp.float32) + b1, 0.0)
    h = jnp.maximum(jnp.dot(h.astype(jnp.bfloat16), w2,
                            preferred_element_type=jnp.float32) + b2, 0.0)
    hb = h.astype(jnp.bfloat16)
    offset = jnp.dot(hb, wx, preferred_element_type=jnp.float32) + bx
    resid = jnp.dot(hb, wf, preferred_element_type=jnp.float32) + bf
    vote_xyz = seed_xyz + offset
    vf = x + resid
    vf = vf * jax.lax.rsqrt(jnp.sum(vf * vf, axis=-1, keepdims=True))
    return vote_xyz, vf


if __name__ == "__main__":
    B, N = 2, 512                      # R = 1024 rows -> 4 parallel row tiles
    key = jax.random.PRNGKey(0)
    k_xyz, k_feat, k_par = jax.random.split(key, 3)

    seed_xyz = jax.random.normal(k_xyz, (B, N, 3), jnp.float32)        # fp2_xyz stand-in
    seed_features = jax.random.normal(k_feat, (B, N, C), jnp.float32)  # fp2_features, channel-last
    params = make_params(k_par)

    vote_xyz, vote_features = jointnet_vote_core(seed_xyz, seed_features, params)
    jax.block_until_ready((vote_xyz, vote_features))

    ref_xyz, ref_feat = reference(seed_xyz, seed_features, params)
    assert jnp.allclose(vote_xyz, ref_xyz, atol=1e-2, rtol=1e-2)
    assert jnp.allclose(vote_features, ref_feat, atol=1e-2, rtol=1e-2)

    print("KERNEL_OK")
</pallas_src>

<mosaic_0001>
module attributes {stable_mosaic.version = 11 : i64} {
  func.func @_vote_kernel(%arg0: i32, %arg1: memref<256x3xf32, #tpu.memory_space<vmem>>, %arg2: memref<256x256xf32, #tpu.memory_space<vmem>>, %arg3: memref<256x256xbf16, #tpu.memory_space<vmem>>, %arg4: memref<1x256xf32, #tpu.memory_space<vmem>>, %arg5: memref<256x256xbf16, #tpu.memory_space<vmem>>, %arg6: memref<1x256xf32, #tpu.memory_space<vmem>>, %arg7: memref<256x3xbf16, #tpu.memory_space<vmem>>, %arg8: memref<1x3xf32, #tpu.memory_space<vmem>>, %arg9: memref<256x256xbf16, #tpu.memory_space<vmem>>, %arg10: memref<1x256xf32, #tpu.memory_space<vmem>>, %arg11: memref<256x3xf32, #tpu.memory_space<vmem>>, %arg12: memref<256x256xf32, #tpu.memory_space<vmem>>) attributes {dimension_semantics = [#tpu.dimension_semantics<parallel>], iteration_bounds = array<i64: 4>, scalar_prefetch = 0 : i64, scratch_operands = 0 : i64, tpu.core_type = #tpu.core_type<tc>, window_params = [{transform_indices = @transform_0, window_bounds = array<i64: 256, 3>}, {transform_indices = @transform_1, window_bounds = array<i64: 256, 256>}, {pipeline_mode = #tpu.pipeline_mode<synchronous>, transform_indices = @transform_2, window_bounds = array<i64: 256, 256>}, {pipeline_mode = #tpu.pipeline_mode<synchronous>, transform_indices = @transform_3, window_bounds = array<i64: 1, 256>}, {pipeline_mode = #tpu.pipeline_mode<synchronous>, transform_indices = @transform_4, window_bounds = array<i64: 256, 256>}, {pipeline_mode = #tpu.pipeline_mode<synchronous>, transform_indices = @transform_5, window_bounds = array<i64: 1, 256>}, {pipeline_mode = #tpu.pipeline_mode<synchronous>, transform_indices = @transform_6, window_bounds = array<i64: 256, 3>}, {pipeline_mode = #tpu.pipeline_mode<synchronous>, transform_indices = @transform_7, window_bounds = array<i64: 1, 3>}, {pipeline_mode = #tpu.pipeline_mode<synchronous>, transform_indices = @transform_8, window_bounds = array<i64: 256, 256>}, {pipeline_mode = #tpu.pipeline_mode<synchronous>, transform_indices = @transform_9, window_bounds = array<i64: 1, 256>}, {transform_indices = @transform_10, window_bounds = array<i64: 256, 3>}, {transform_indices = @transform_11, window_bounds = array<i64: 256, 256>}]} {
    %c0 = arith.constant 0 : index
    %c0_0 = arith.constant 0 : index
    %0 = vector.load %arg2[%c0, %c0_0] : memref<256x256xf32, #tpu.memory_space<vmem>>, vector<256x256xf32>
    %1 = arith.truncf %0 : vector<256x256xf32> to vector<256x256xbf16>
    %c0_1 = arith.constant 0 : index
    %c0_2 = arith.constant 0 : index
    %2 = vector.load %arg3[%c0_1, %c0_2] : memref<256x256xbf16, #tpu.memory_space<vmem>>, vector<256x256xbf16>
    %cst = arith.constant dense<0.000000e+00> : vector<256x256xf32>
    %3 = tpu.matmul %1, %2, %cst {dimension_numbers = #tpu.dot_dimension_numbers<[1], [0], [0], [1], [0, 0, 1, 1], [], []>} : vector<256x256xbf16>, vector<256x256xbf16>, vector<256x256xf32> -> vector<256x256xf32>
    %c0_3 = arith.constant 0 : index
    %c0_4 = arith.constant 0 : index
    %4 = vector.load %arg4[%c0_3, %c0_4] : memref<1x256xf32, #tpu.memory_space<vmem>>, vector<1x256xf32>
    %5 = vector.broadcast %4 : vector<1x256xf32> to vector<256x256xf32>
    %6 = arith.addf %3, %5 : vector<256x256xf32>
    %cst_5 = arith.constant 0.000000e+00 : f32
    %7 = vector.broadcast %cst_5 : f32 to vector<256x256xf32>
    %8 = arith.maximumf %6, %7 : vector<256x256xf32>
    %9 = arith.truncf %8 : vector<256x256xf32> to vector<256x256xbf16>
    %c0_6 = arith.constant 0 : index
    %c0_7 = arith.constant 0 : index
    %10 = vector.load %arg5[%c0_6, %c0_7] : memref<256x256xbf16, #tpu.memory_space<vmem>>, vector<256x256xbf16>
    %cst_8 = arith.constant dense<0.000000e+00> : vector<256x256xf32>
    %11 = tpu.matmul %9, %10, %cst_8 {dimension_numbers = #tpu.dot_dimension_numbers<[1], [0], [0], [1], [0, 0, 1, 1], [], []>} : vector<256x256xbf16>, vector<256x256xbf16>, vector<256x256xf32> -> vector<256x256xf32>
    %c0_9 = arith.constant 0 : index
    %c0_10 = arith.constant 0 : index
    %12 = vector.load %arg6[%c0_9, %c0_10] : memref<1x256xf32, #tpu.memory_space<vmem>>, vector<1x256xf32>
    %13 = vector.broadcast %12 : vector<1x256xf32> to vector<256x256xf32>
    %14 = arith.addf %11, %13 : vector<256x256xf32>
    %cst_11 = arith.constant 0.000000e+00 : f32
    %15 = vector.broadcast %cst_11 : f32 to vector<256x256xf32>
    %16 = arith.maximumf %14, %15 : vector<256x256xf32>
    %17 = arith.truncf %16 : vector<256x256xf32> to vector<256x256xbf16>
    %c0_12 = arith.constant 0 : index
    %c0_13 = arith.constant 0 : index
    %18 = vector.load %arg7[%c0_12, %c0_13] : memref<256x3xbf16, #tpu.memory_space<vmem>>, vector<256x3xbf16>
    %cst_14 = arith.constant dense<0.000000e+00> : vector<256x3xf32>
    %19 = tpu.matmul %17, %18, %cst_14 {dimension_numbers = #tpu.dot_dimension_numbers<[1], [0], [0], [1], [0, 0, 1, 1], [], []>} : vector<256x256xbf16>, vector<256x3xbf16>, vector<256x3xf32> -> vector<256x3xf32>
    %c0_15 = arith.constant 0 : index
    %c0_16 = arith.constant 0 : index
    %20 = vector.load %arg8[%c0_15, %c0_16] : memref<1x3xf32, #tpu.memory_space<vmem>>, vector<1x3xf32>
    %21 = vector.broadcast %20 : vector<1x3xf32> to vector<256x3xf32>
    %22 = arith.addf %19, %21 : vector<256x3xf32>
    %c0_17 = arith.constant 0 : index
    %c0_18 = arith.constant 0 : index
    %23 = vector.load %arg9[%c0_17, %c0_18] : memref<256x256xbf16, #tpu.memory_space<vmem>>, vector<256x256xbf16>
    %cst_19 = arith.constant dense<0.000000e+00> : vector<256x256xf32>
    %24 = tpu.matmul %17, %23, %cst_19 {dimension_numbers = #tpu.dot_dimension_numbers<[1], [0], [0], [1], [0, 0, 1, 1], [], []>} : vector<256x256xbf16>, vector<256x256xbf16>, vector<256x256xf32> -> vector<256x256xf32>
    %c0_20 = arith.constant 0 : index
    %c0_21 = arith.constant 0 : index
    %25 = vector.load %arg10[%c0_20, %c0_21] : memref<1x256xf32, #tpu.memory_space<vmem>>, vector<1x256xf32>
    %26 = vector.broadcast %25 : vector<1x256xf32> to vector<256x256xf32>
    %27 = arith.addf %24, %26 : vector<256x256xf32>
    %c0_22 = arith.constant 0 : index
    %c0_23 = arith.constant 0 : index
    %28 = vector.load %arg1[%c0_22, %c0_23] : memref<256x3xf32, #tpu.memory_space<vmem>>, vector<256x3xf32>
    %29 = arith.addf %28, %22 : vector<256x3xf32>
    %c0_24 = arith.constant 0 : index
    %c0_25 = arith.constant 0 : index
    %30 = vector.load %arg11[%c0_24, %c0_25] : memref<256x3xf32, #tpu.memory_space<vmem>>, vector<256x3xf32>
    tpu.vector_store %arg11[%c0_24, %c0_25], %29 {strides = array<i32>} : memref<256x3xf32, #tpu.memory_space<vmem>>, vector<256x3xf32>,
    %31 = arith.addf %0, %27 : vector<256x256xf32>
    %32 = arith.mulf %31, %31 : vector<256x256xf32>
    %cst_26 = arith.constant dense<0.000000e+00> : vector<256xf32>
    %33 = vector.multi_reduction <add>, %32, %cst_26 [1] : vector<256x256xf32> to vector<256xf32>
    %34 = vector.shape_cast %33 : vector<256xf32> to vector<256x1xf32>
    %35 = math.rsqrt %34 : vector<256x1xf32>
    %36 = vector.broadcast %35 : vector<256x1xf32> to vector<256x256xf32>
    %37 = arith.mulf %31, %36 : vector<256x256xf32>
    %c0_27 = arith.constant 0 : index
    %c0_28 = arith.constant 0 : index
    %38 = vector.load %arg12[%c0_27, %c0_28] : memref<256x256xf32, #tpu.memory_space<vmem>>, vector<256x256xf32>
    tpu.vector_store %arg12[%c0_27, %c0_28], %37 {strides = array<i32>} : memref<256x256xf32, #tpu.memory_space<vmem>>, vector<256x256xf32>,
    return
  }
  func.func @transform_0(%arg0: i32) -> (i32, i32) {
    %c0_i32 = arith.constant 0 : i32
    %c0_i32_0 = arith.constant 0 : i32
    return %arg0, %c0_i32 : i32, i32
  }
  func.func @transform_1(%arg0: i32) -> (i32, i32) {
    %c0_i32 = arith.constant 0 : i32
    %c0_i32_0 = arith.constant 0 : i32
    return %arg0, %c0_i32 : i32, i32
  }
  func.func @transform_2(%arg0: i32) -> (i32, i32) {
    %c0_i32 = arith.constant 0 : i32
    %c0_i32_0 = arith.constant 0 : i32
    %c0_i32_1 = arith.constant 0 : i32
    return %c0_i32, %c0_i32_0 : i32, i32
  }
  func.func @transform_3(%arg0: i32) -> (i32, i32) {
    %c0_i32 = arith.constant 0 : i32
    %c0_i32_0 = arith.constant 0 : i32
    %c0_i32_1 = arith.constant 0 : i32
    return %c0_i32, %c0_i32_0 : i32, i32
  }
  func.func @transform_4(%arg0: i32) -> (i32, i32) {
    %c0_i32 = arith.constant 0 : i32
    %c0_i32_0 = arith.constant 0 : i32
    %c0_i32_1 = arith.constant 0 : i32
    return %c0_i32, %c0_i32_0 : i32, i32
  }
  func.func @transform_5(%arg0: i32) -> (i32, i32) {
    %c0_i32 = arith.constant 0 : i32
    %c0_i32_0 = arith.constant 0 : i32
    %c0_i32_1 = arith.constant 0 : i32
    return %c0_i32, %c0_i32_0 : i32, i32
  }
  func.func @transform_6(%arg0: i32) -> (i32, i32) {
    %c0_i32 = arith.constant 0 : i32
    %c0_i32_0 = arith.constant 0 : i32
    %c0_i32_1 = arith.constant 0 : i32
    return %c0_i32, %c0_i32_0 : i32, i32
  }
  func.func @transform_7(%arg0: i32) -> (i32, i32) {
    %c0_i32 = arith.constant 0 : i32
    %c0_i32_0 = arith.constant 0 : i32
    %c0_i32_1 = arith.constant 0 : i32
    return %c0_i32, %c0_i32_0 : i32, i32
  }
  func.func @transform_8(%arg0: i32) -> (i32, i32) {
    %c0_i32 = arith.constant 0 : i32
    %c0_i32_0 = arith.constant 0 : i32
    %c0_i32_1 = arith.constant 0 : i32
    return %c0_i32, %c0_i32_0 : i32, i32
  }
  func.func @transform_9(%arg0: i32) -> (i32, i32) {
    %c0_i32 = arith.constant 0 : i32
    %c0_i32_0 = arith.constant 0 : i32
    %c0_i32_1 = arith.constant 0 : i32
    return %c0_i32, %c0_i32_0 : i32, i32
  }
  func.func @transform_10(%arg0: i32) -> (i32, i32) {
    %c0_i32 = arith.constant 0 : i32
    %c0_i32_0 = arith.constant 0 : i32
    return %arg0, %c0_i32 : i32, i32
  }
  func.func @transform_11(%arg0: i32) -> (i32, i32) {
    %c0_i32 = arith.constant 0 : i32
    %c0_i32_0 = arith.constant 0 : i32
    return %arg0, %c0_i32 : i32, i32
  }
}

</mosaic_0001>

<llo_original>
// kernel: tpu_custom_call.1
$region0: #{tpu_custom_call.1}
  #allocation0 [shape = 'u32[]', space=smem, size = 0x4, offset = 0x4, fixed_abs, tag = 'smem constant byte address 0x4 - core index']
  #allocation1 [shape = 'u32[144,128]{1,0:T(1,128)}', space=vmem, size = 0x12000, scoped, tag = 'internal scratch']
  %s0 = inlined_call_operand.vmem [shape: f32[1024,3], index: 0, kind: input, shape index: {}]
  %s1 = inlined_call_operand.hbm [shape: f32[1024,256], index: 1, kind: input, shape index: {}]
  %s2 = inlined_call_operand.vmem [shape: bf16[256,256], index: 2, kind: input, shape index: {}]
  %s3 = inlined_call_operand.vmem [shape: f32[1,256], index: 3, kind: input, shape index: {}]
  %s4 = inlined_call_operand.vmem [shape: bf16[256,256], index: 4, kind: input, shape index: {}]
  %s5 = inlined_call_operand.vmem [shape: f32[1,256], index: 5, kind: input, shape index: {}]
  %s6 = inlined_call_operand.vmem [shape: bf16[256,3], index: 6, kind: input, shape index: {}]
  %s7 = inlined_call_operand.vmem [shape: f32[1,3], index: 7, kind: input, shape index: {}]
  %s8 = inlined_call_operand.vmem [shape: bf16[256,256], index: 8, kind: input, shape index: {}]
  %s9 = inlined_call_operand.vmem [shape: f32[1,256], index: 9, kind: input, shape index: {}]
  %s10 = inlined_call_operand.vmem [shape: f32[1024,3], index: 10, kind: output, shape index: {0}]
  %s11 = inlined_call_operand.hbm [shape: f32[1024,256], index: 11, kind: output, shape index: {1}]
  %12 = xla_tuple %s10, %s11
  %s13 = sld [smem:[#allocation0]]
  $region85: #{tpu_custom_call.1} parent=0
    _
  %s15 = ssub.s32 1, %s13
  %s16 = scalar_select 0, %s15, %s13
  $region1: #{tpu_custom_call.1} parent=0
    #allocation2 [shape = 'u8[524288]{0}', space=vmem, size = 0x80000, scoped, tag = 'input window, operand 1']
    #allocation3 [shape = 's32[2]{0}', space=sflag, size = 0x8, scoped, tag = 'scoped memory for tpu_custom_call.1']
    #allocation4 [shape = 's32[2]{0}', space=sflag, size = 0x8, scoped, tag = 'scoped memory for tpu_custom_call.1']
    #allocation5 [shape = 'u8[524288]{0}', space=vmem, size = 0x80000, scoped, tag = 'output window, operand 1']
    %17 = vsyncpa [#allocation3], 0
    %s18 = scalar_lea.sflag [#allocation3], 1
    %19 = vsyncpa %s18, 0
    %20 = vsyncpa [#allocation4], 0
    %s21 = scalar_lea.sflag [#allocation4], 1
    %22 = vsyncpa %s21, 0
    loop: start=0, step=1, limit=6
    $region2: #{tpu_custom_call.1} parent=1 // loop_pre_header
      _
    $region3: #{tpu_custom_call.1} parent=1 // loop_header
      %s24 = sphi 0, %s28
      %p25 = scmp.ge.s32.totalorder %s24, 6
      %s34 = sphi 0, %s36
      %s37 = sphi 0, %s34
      %s38 = sphi 0, %s37
      %s54 = sphi 0, %s38
      %s60 = sphi 0, %s62
      %s63 = sphi 0, %s60
      %s64 = sphi 0, %s63
      %s80 = sphi 0, %s64
      %s84 = sphi 0, %s84
      %s86 = sphi 0, %s84
      %s87 = sphi 0, %s86
      %s101 = sphi 0, %s87
      %s105 = sphi 0, %s105
      %s107 = sphi 0, %s105
      %s108 = sphi 0, %s107
      %s122 = sphi 0, %s108
      %s126 = sphi 0, %s126
      %s128 = sphi 0, %s126
      %s129 = sphi 0, %s128
      %s143 = sphi 0, %s129
      %s147 = sphi 0, %s147
      %s149 = sphi 0, %s147
      %s150 = sphi 0, %s149
      %s164 = sphi 0, %s150
      %s168 = sphi 0, %s168
      %s170 = sphi 0, %s168
      %s171 = sphi 0, %s170
      %s185 = sphi 0, %s171
      %s189 = sphi 0, %s189
      %s191 = sphi 0, %s189
      %s192 = sphi 0, %s191
      %s206 = sphi 0, %s192
      %s210 = sphi 0, %s210
      %s212 = sphi 0, %s210
      %s213 = sphi 0, %s212
      %s227 = sphi 0, %s213
      %s231 = sphi 0, %s231
      %s233 = sphi 0, %s231
      %s234 = sphi 0, %s233
      %s248 = sphi 0, %s234
      %s254 = sphi 0, %s256
      %s257 = sphi 0, %s254
      %s258 = sphi 0, %s257
      %s274 = sphi 0, %s258
      %s280 = sphi 0, %s282
      %s283 = sphi 0, %s280
      %s284 = sphi 0, %s283
      %s300 = sphi 0, %s284
    $region4: #{tpu_custom_call.1} parent=1 // loop_header_branch
      %27 = sbr.rel (%p25) target = $region8
    $region5: #{tpu_custom_call.1} parent=1 // loop_body
      %s29 = ssub.s32 %s24, 1
      %s30 = ssub.s32 %s24, 2
      %s31 = sadd.s32 %s24, 1
      %s32 = ssub.s32 %s24, %s31
      %p33 = scmp.eq.s32.totalorder %s32, 0
      %s35 = sadd.s32 %s34, 1
      %s36 = scalar_select %p33, %s34, %s35
      %p39 = pneg %p33
      %p40 = scmp.eq.s32.totalorder %s24, 3
      %p41 = por %p39, %p40
      %p42 = scmp.ne.s32.totalorder %s34, %s37
      %p43 = scmp.eq.s32.totalorder %s24, 0
      %p44 = por %p42, %p43
      %p45 = scmp.ne.s32.totalorder %s34, %s37
      %p46 = scmp.eq.s32.totalorder %s29, 3
      %p47 = por %p45, %p46
      %p48 = scmp.ne.s32.totalorder %s37, %s38
      %p49 = scmp.eq.s32.totalorder %s29, 0
      %p50 = por %p48, %p49
      %p51 = scmp.ne.s32.totalorder %s37, %s38
      %p52 = scmp.eq.s32.totalorder %s30, 3
      %p53 = por %p51, %p52
      %p55 = scmp.ne.s32.totalorder %s38, %s54
      %p56 = scmp.eq.s32.totalorder %s30, 0
      %p57 = por %p55, %p56
      %s58 = ssub.s32 %s24, %s31
      %p59 = scmp.eq.s32.totalorder %s58, 0
      %s61 = sadd.s32 %s60, 1
      %s62 = scalar_select %p59, %s60, %s61
      %p65 = pneg %p59
      %p66 = scmp.eq.s32.totalorder %s24, 3
      %p67 = por %p65, %p66
      %p68 = scmp.ne.s32.totalorder %s60, %s63
      %p69 = scmp.eq.s32.totalorder %s24, 0
      %p70 = por %p68, %p69
      %p71 = scmp.ne.s32.totalorder %s60, %s63
      %p72 = scmp.eq.s32.totalorder %s29, 3
      %p73 = por %p71, %p72
      %p74 = scmp.ne.s32.totalorder %s63, %s64
      %p75 = scmp.eq.s32.totalorder %s29, 0
      %p76 = por %p74, %p75
      %p77 = scmp.ne.s32.totalorder %s63, %s64
      %p78 = scmp.eq.s32.totalorder %s30, 3
      %p79 = por %p77, %p78
      %p81 = scmp.ne.s32.totalorder %s64, %s80
      %p82 = scmp.eq.s32.totalorder %s30, 0
      %p83 = por %p81, %p82
      %s85 = sadd.s32 %s84, 1
      %p88 = scmp.eq.s32.totalorder %s24, 3
      %p89 = scmp.ne.s32.totalorder %s84, %s86
      %p90 = scmp.eq.s32.totalorder %s24, 0
      %p91 = por %p89, %p90
      %p92 = scmp.ne.s32.totalorder %s84, %s86
      %p93 = scmp.eq.s32.totalorder %s29, 3
      %p94 = por %p92, %p93
      %p95 = scmp.ne.s32.totalorder %s86, %s87
      %p96 = scmp.eq.s32.totalorder %s29, 0
      %p97 = por %p95, %p96
      %p98 = scmp.ne.s32.totalorder %s86, %s87
      %p99 = scmp.eq.s32.totalorder %s30, 3
      %p100 = por %p98, %p99
      %p102 = scmp.ne.s32.totalorder %s87, %s101
      %p103 = scmp.eq.s32.totalorder %s30, 0
      %p104 = por %p102, %p103
      %s106 = sadd.s32 %s105, 1
      %p109 = scmp.eq.s32.totalorder %s24, 3
      %p110 = scmp.ne.s32.totalorder %s105, %s107
      %p111 = scmp.eq.s32.totalorder %s24, 0
      %p112 = por %p110, %p111
      %p113 = scmp.ne.s32.totalorder %s105, %s107
      %p114 = scmp.eq.s32.totalorder %s29, 3
      %p115 = por %p113, %p114
      %p116 = scmp.ne.s32.totalorder %s107, %s108
      %p117 = scmp.eq.s32.totalorder %s29, 0
      %p118 = por %p116, %p117
      %p119 = scmp.ne.s32.totalorder %s107, %s108
      %p120 = scmp.eq.s32.totalorder %s30, 3
      %p121 = por %p119, %p120
      %p123 = scmp.ne.s32.totalorder %s108, %s122
      %p124 = scmp.eq.s32.totalorder %s30, 0
      %p125 = por %p123, %p124
      %s127 = sadd.s32 %s126, 1
      %p130 = scmp.eq.s32.totalorder %s24, 3
      %p131 = scmp.ne.s32.totalorder %s126, %s128
      %p132 = scmp.eq.s32.totalorder %s24, 0
      %p133 = por %p131, %p132
      %p134 = scmp.ne.s32.totalorder %s126, %s128
      %p135 = scmp.eq.s32.totalorder %s29, 3
      %p136 = por %p134, %p135
      %p137 = scmp.ne.s32.totalorder %s128, %s129
      %p138 = scmp.eq.s32.totalorder %s29, 0
      %p139 = por %p137, %p138
      %p140 = scmp.ne.s32.totalorder %s128, %s129
      %p141 = scmp.eq.s32.totalorder %s30, 3
      %p142 = por %p140, %p141
      %p144 = scmp.ne.s32.totalorder %s129, %s143
      %p145 = scmp.eq.s32.totalorder %s30, 0
      %p146 = por %p144, %p145
      %s148 = sadd.s32 %s147, 1
      %p151 = scmp.eq.s32.totalorder %s24, 3
      %p152 = scmp.ne.s32.totalorder %s147, %s149
      %p153 = scmp.eq.s32.totalorder %s24, 0
      %p154 = por %p152, %p153
      %p155 = scmp.ne.s32.totalorder %s147, %s149
      %p156 = scmp.eq.s32.totalorder %s29, 3
      %p157 = por %p155, %p156
      %p158 = scmp.ne.s32.totalorder %s149, %s150
      %p159 = scmp.eq.s32.totalorder %s29, 0
      %p160 = por %p158, %p159
      %p161 = scmp.ne.s32.totalorder %s149, %s150
      %p162 = scmp.eq.s32.totalorder %s30, 3
      %p163 = por %p161, %p162
      %p165 = scmp.ne.s32.totalorder %s150, %s164
      %p166 = scmp.eq.s32.totalorder %s30, 0
      %p167 = por %p165, %p166
      %s169 = sadd.s32 %s168, 1
      %p172 = scmp.eq.s32.totalorder %s24, 3
      %p173 = scmp.ne.s32.totalorder %s168, %s170
      %p174 = scmp.eq.s32.totalorder %s24, 0
      %p175 = por %p173, %p174
      %p176 = scmp.ne.s32.totalorder %s168, %s170
      %p177 = scmp.eq.s32.totalorder %s29, 3
      %p178 = por %p176, %p177
      %p179 = scmp.ne.s32.totalorder %s170, %s171
      %p180 = scmp.eq.s32.totalorder %s29, 0
      %p181 = por %p179, %p180
      %p182 = scmp.ne.s32.totalorder %s170, %s171
      %p183 = scmp.eq.s32.totalorder %s30, 3
      %p184 = por %p182, %p183
      %p186 = scmp.ne.s32.totalorder %s171, %s185
      %p187 = scmp.eq.s32.totalorder %s30, 0
      %p188 = por %p186, %p187
      %s190 = sadd.s32 %s189, 1
      %p193 = scmp.eq.s32.totalorder %s24, 3
      %p194 = scmp.ne.s32.totalorder %s189, %s191
      %p195 = scmp.eq.s32.totalorder %s24, 0
      %p196 = por %p194, %p195
      %p197 = scmp.ne.s32.totalorder %s189, %s191
      %p198 = scmp.eq.s32.totalorder %s29, 3
      %p199 = por %p197, %p198
      %p200 = scmp.ne.s32.totalorder %s191, %s192
      %p201 = scmp.eq.s32.totalorder %s29, 0
      %p202 = por %p200, %p201
      %p203 = scmp.ne.s32.totalorder %s191, %s192
      %p204 = scmp.eq.s32.totalorder %s30, 3
      %p205 = por %p203, %p204
      %p207 = scmp.ne.s32.totalorder %s192, %s206
      %p208 = scmp.eq.s32.totalorder %s30, 0
      %p209 = por %p207, %p208
      %s211 = sadd.s32 %s210, 1
      %p214 = scmp.eq.s32.totalorder %s24, 3
      %p215 = scmp.ne.s32.totalorder %s210, %s212
      %p216 = scmp.eq.s32.totalorder %s24, 0
      %p217 = por %p215, %p216
      %p218 = scmp.ne.s32.totalorder %s210, %s212
      %p219 = scmp.eq.s32.totalorder %s29, 3
      %p220 = por %p218, %p219
      %p221 = scmp.ne.s32.totalorder %s212, %s213
      %p222 = scmp.eq.s32.totalorder %s29, 0
      %p223 = por %p221, %p222
      %p224 = scmp.ne.s32.totalorder %s212, %s213
      %p225 = scmp.eq.s32.totalorder %s30, 3
      %p226 = por %p224, %p225
      %p228 = scmp.ne.s32.totalorder %s213, %s227
      %p229 = scmp.eq.s32.totalorder %s30, 0
      %p230 = por %p228, %p229
      %s232 = sadd.s32 %s231, 1
      %p235 = scmp.eq.s32.totalorder %s24, 3
      %p236 = scmp.ne.s32.totalorder %s231, %s233
      %p237 = scmp.eq.s32.totalorder %s24, 0
      %p238 = por %p236, %p237
      %p239 = scmp.ne.s32.totalorder %s231, %s233
      %p240 = scmp.eq.s32.totalorder %s29, 3
      %p241 = por %p239, %p240
      %p242 = scmp.ne.s32.totalorder %s233, %s234
      %p243 = scmp.eq.s32.totalorder %s29, 0
      %p244 = por %p242, %p243
      %p245 = scmp.ne.s32.totalorder %s233, %s234
      %p246 = scmp.eq.s32.totalorder %s30, 3
      %p247 = por %p245, %p246
      %p249 = scmp.ne.s32.totalorder %s234, %s248
      %p250 = scmp.eq.s32.totalorder %s30, 0
      %p251 = por %p249, %p250
      %s252 = ssub.s32 %s24, %s31
      %p253 = scmp.eq.s32.totalorder %s252, 0
      %s255 = sadd.s32 %s254, 1
      %s256 = scalar_select %p253, %s254, %s255
      %p259 = pneg %p253
      %p260 = scmp.eq.s32.totalorder %s24, 3
      %p261 = por %p259, %p260
      %p262 = scmp.ne.s32.totalorder %s254, %s257
      %p263 = scmp.eq.s32.totalorder %s24, 0
      %p264 = por %p262, %p263
      %p265 = scmp.ne.s32.totalorder %s254, %s257
      %p266 = scmp.eq.s32.totalorder %s29, 3
      %p267 = por %p265, %p266
      %p268 = scmp.ne.s32.totalorder %s257, %s258
      %p269 = scmp.eq.s32.totalorder %s29, 0
      %p270 = por %p268, %p269
      %p271 = scmp.ne.s32.totalorder %s257, %s258
      %p272 = scmp.eq.s32.totalorder %s30, 3
      %p273 = por %p271, %p272
      %p275 = scmp.ne.s32.totalorder %s258, %s274
      %p276 = scmp.eq.s32.totalorder %s30, 0
      %p277 = por %p275, %p276
      %s278 = ssub.s32 %s24, %s31
      %p279 = scmp.eq.s32.totalorder %s278, 0
      %s281 = sadd.s32 %s280, 1
      %s282 = scalar_select %p279, %s280, %s281
      %p285 = pneg %p279
      %p286 = scmp.eq.s32.totalorder %s24, 3
      %p287 = por %p285, %p286
      %p288 = scmp.ne.s32.totalorder %s280, %s283
      %p289 = scmp.eq.s32.totalorder %s24, 0
      %p290 = por %p288, %p289
      %p291 = scmp.ne.s32.totalorder %s280, %s283
      %p292 = scmp.eq.s32.totalorder %s29, 3
      %p293 = por %p291, %p292
      %p294 = scmp.ne.s32.totalorder %s283, %s284
      %p295 = scmp.eq.s32.totalorder %s29, 0
      %p296 = por %p294, %p295
      %p297 = scmp.ne.s32.totalorder %s283, %s284
      %p298 = scmp.eq.s32.totalorder %s30, 3
      %p299 = por %p297, %p298
      %p301 = scmp.ne.s32.totalorder %s284, %s300
      %p302 = scmp.eq.s32.totalorder %s30, 0
      %p303 = por %p301, %p302
      %p304 = scmp.le.s32.totalorder 1, %s24
      %p305 = scmp.lt.s32.totalorder %s24, 5
      %p306 = pnand %p304, %p305
      %p307 = pneg %p306
      // Predicated region
      $region9: #{tpu_custom_call.1} parent=5 // pred_check
        _
      $region10: #{tpu_custom_call.1} parent=5 // pred_check_branch
        %309 = sbr.rel (%p306) target = $region12
      $region11: #{tpu_custom_call.1} parent=5 // pred_region
        %s310 = ssub.s32 %s24, 1
        // Predicated region
        $region13: #{tpu_custom_call.1} parent=11 // pred_check
          %p311 = pneg %p97
        $region14: #{tpu_custom_call.1} parent=11 // pred_check_branch
          %313 = sbr.rel (%p311) target = $region16
        $region15: #{tpu_custom_call.1} parent=11 // pred_region
          _
        $region16: #{tpu_custom_call.1} parent=11 // pred_fallthru
          _
        // Predicated region
        $region17: #{tpu_custom_call.1} parent=11 // pred_check
          %p314 = pneg %p118
        $region18: #{tpu_custom_call.1} parent=11 // pred_check_branch
          %316 = sbr.rel (%p314) target = $region20
        $region19: #{tpu_custom_call.1} parent=11 // pred_region
          _
        $region20: #{tpu_custom_call.1} parent=11 // pred_fallthru
          _
        // Predicated region
        $region21: #{tpu_custom_call.1} parent=11 // pred_check
          %p317 = pneg %p139
        $region22: #{tpu_custom_call.1} parent=11 // pred_check_branch
          %319 = sbr.rel (%p317) target = $region24
        $region23: #{tpu_custom_call.1} parent=11 // pred_region
          _
        $region24: #{tpu_custom_call.1} parent=11 // pred_fallthru
          _
        // Predicated region
        $region25: #{tpu_custom_call.1} parent=11 // pred_check
          %p320 = pneg %p160
        $region26: #{tpu_custom_call.1} parent=11 // pred_check_branch
          %322 = sbr.rel (%p320) target = $region28
        $region27: #{tpu_custom_call.1} parent=11 // pred_region
          _
        $region28: #{tpu_custom_call.1} parent=11 // pred_fallthru
          _
        // Predicated region
        $region29: #{tpu_custom_call.1} parent=11 // pred_check
          %p323 = pneg %p181
        $region30: #{tpu_custom_call.1} parent=11 // pred_check_branch
          %325 = sbr.rel (%p323) target = $region32
        $region31: #{tpu_custom_call.1} parent=11 // pred_region
          _
        $region32: #{tpu_custom_call.1} parent=11 // pred_fallthru
          _
        // Predicated region
        $region33: #{tpu_custom_call.1} parent=11 // pred_check
          %p326 = pneg %p202
        $region34: #{tpu_custom_call.1} parent=11 // pred_check_branch
          %328 = sbr.rel (%p326) target = $region36
        $region35: #{tpu_custom_call.1} parent=11 // pred_region
          _
        $region36: #{tpu_custom_call.1} parent=11 // pred_fallthru
          _
        // Predicated region
        $region37: #{tpu_custom_call.1} parent=11 // pred_check
          %p329 = pneg %p223
        $region38: #{tpu_custom_call.1} parent=11 // pred_check_branch
          %331 = sbr.rel (%p329) target = $region40
        $region39: #{tpu_custom_call.1} parent=11 // pred_region
          _
        $region40: #{tpu_custom_call.1} parent=11 // pred_fallthru
          _
        // Predicated region
        $region41: #{tpu_custom_call.1} parent=11 // pred_check
          %p332 = pneg %p244
        $region42: #{tpu_custom_call.1} parent=11 // pred_check_branch
          %334 = sbr.rel (%p332) target = $region44
        $region43: #{tpu_custom_call.1} parent=11 // pred_region
          _
        $region44: #{tpu_custom_call.1} parent=11 // pred_fallthru
          _
      $region12: #{tpu_custom_call.1} parent=5 // pred_fallthru
        _
      %p335 = scmp.lt.s32.totalorder %s24, 4
      // Predicated region
      $region45: #{tpu_custom_call.1} parent=5 // pred_check
        %p336 = pneg %p335
      $region46: #{tpu_custom_call.1} parent=5 // pred_check_branch
        %338 = sbr.rel (%p336) target = $region48
      $region47: #{tpu_custom_call.1} parent=5 // pred_region
        // Predicated region
        $region49: #{tpu_custom_call.1} parent=47 // pred_check
          %p339 = pneg %p44
        $region50: #{tpu_custom_call.1} parent=47 // pred_check_branch
          %341 = sbr.rel (%p339) target = $region52
        $region51: #{tpu_custom_call.1} parent=47 // pred_region
          %s342 = smul.u32 32, %s24
          %p343 = scmp.lt.s32.totalorder %s342, 127
          %s344 = scalar_select %p343, %s342, 127
          %s345 = smul.addr %s344, 8
          %s346 = scalar_lea.vmem %s0, %s345
          %s347 = smul.u32 32, %s24
        $region52: #{tpu_custom_call.1} parent=47 // pred_fallthru
          _
        // Predicated region
        $region53: #{tpu_custom_call.1} parent=47 // pred_check
          %p348 = pneg %p70
        $region54: #{tpu_custom_call.1} parent=47 // pred_check_branch
          %350 = sbr.rel (%p348) target = $region56
        $region55: #{tpu_custom_call.1} parent=47 // pred_region
          %s351 = sand.u32 %s60, 1
          %s352 = scalar_lea.sflag [#allocation3], %s351
          %s353 = sand.u32 %s60, 1
          %s354 = smul.addr %s353, 512
          %s355 = scalar_lea.vmem [#allocation2], %s354
          %s356 = smul.u32 32, %s24
          %s358 = ssub.s32 8192, 8192
          %359 = vsyncadd %s352, %s358
          %s360 = smul.addr %s356, 2
          %s361 = smul.addr %s360, 128
          %s362 = scalar_lea.hbm %s1, %s361
          %s363 = sshll.u32 %s355, 4
          %s364 = int_to_ptr.vmem [resolvable:$true] %s363
          %369 = dma.hbm_to_vmem [thread:$0]  %s362, 8192, %s364, %s352, 256, 256, 16
        $region56: #{tpu_custom_call.1} parent=47 // pred_fallthru
          _
      $region48: #{tpu_custom_call.1} parent=5 // pred_fallthru
        _
      %p370 = scmp.le.s32.totalorder 1, %s24
      %p371 = scmp.lt.s32.totalorder %s24, 5
      %p372 = pnand %p370, %p371
      %p373 = pneg %p372
      // Predicated region
      $region57: #{tpu_custom_call.1} parent=5 // pred_check
        _
      $region58: #{tpu_custom_call.1} parent=5 // pred_check_branch
        %375 = sbr.rel (%p372) target = $region60
      $region59: #{tpu_custom_call.1} parent=5 // pred_region
        %s376 = ssub.s32 %s24, 1
        %s377 = sand.u32 %s63, 1
        %s378 = scalar_lea.sflag [#allocation3], %s377
        %s379 = sand.u32 %s63, 1
        %s380 = smul.addr %s379, 512
        %s381 = scalar_lea.vmem [#allocation2], %s380
        // Predicated region
        $region61: #{tpu_custom_call.1} parent=59 // pred_check
          %p382 = pneg %p76
        $region62: #{tpu_custom_call.1} parent=59 // pred_check_branch
          %384 = sbr.rel (%p382) target = $region64
        $region63: #{tpu_custom_call.1} parent=59 // pred_region
          %385 = dma.done %s378, 8192
        $region64: #{tpu_custom_call.1} parent=59 // pred_fallthru
          _
        %s386 = smul.u32 32, %s29
        %p387 = scmp.lt.s32.totalorder %s386, 127
        %s388 = scalar_select %p387, %s386, 127
        %s389 = smul.addr %s388, 8
        %s390 = scalar_lea.vmem %s0, %s389
        %p391 = pneg %p50
        %p392 = pneg %p47
        %s393 = sand.u32 %s63, 1
        %s394 = scalar_lea.sflag [#allocation3], %s393
        %s395 = sand.u32 %s63, 1
        %s396 = smul.addr %s395, 512
        %s397 = scalar_lea.vmem [#allocation2], %s396
        %p398 = pneg %p76
        %p399 = pneg %p73
        %p400 = pneg %p97
        %p401 = pneg %p94
        %p402 = pneg %p118
        %p403 = pneg %p115
        %p404 = pneg %p139
        %p405 = pneg %p136
        %p406 = pneg %p160
        %p407 = pneg %p157
        %p408 = pneg %p181
        %p409 = pneg %p178
        %p410 = pneg %p202
        %p411 = pneg %p199
        %p412 = pneg %p223
        %p413 = pneg %p220
        %p414 = pneg %p244
        %p415 = pneg %p241
        %p416 = pneg %p270
        %p417 = pneg %p267
        %s418 = smul.u32 32, %s29
        %p419 = scmp.lt.s32.totalorder %s418, 127
        %s420 = scalar_select %p419, %s418, 127
        %s421 = smul.addr %s420, 8
        %s422 = scalar_lea.vmem %s10, %s421
        %p423 = pneg %p296
        %p424 = pneg %p293
        %s425 = sand.u32 %s283, 1
        %s426 = scalar_lea.sflag [#allocation4], %s425
        %s427 = sand.u32 %s283, 1
        %s428 = smul.addr %s427, 512
        %s429 = scalar_lea.vmem [#allocation5], %s428
        %s430 = smul.u32 32, %s29
        %p431 = scmp.lt.s32.totalorder %s430, 127
        %s432 = scalar_select %p431, %s430, 127
        %s433 = smul.addr %s432, 8
        %s434 = scalar_lea.vmem %s0, %s433
        %s435 = smul.u32 32, %s29
        %s436 = smul.u32 32, %s29
        %s437 = smul.u32 32, %s29
        %p438 = scmp.lt.s32.totalorder %s437, 127
        %s439 = scalar_select %p438, %s437, 127
        %s440 = smul.addr %s439, 8
        %s441 = scalar_lea.vmem %s10, %s440
        %s442 = smul.u32 32, %s29
        %s443 = smul.u32 32, %s29
        %v445 = vld [vmem:[%s381] sm:$0xff]
        %v446 = vld [vmem:[%s381 + $0x8] sm:$0xff]
        %v447 = vld [vmem:[%s381 + $0x10] sm:$0xff]
        %v448 = vld [vmem:[%s381 + $0x18] sm:$0xff]
        %v449 = vld [vmem:[%s381 + $0x20] sm:$0xff]
        %v450 = vld [vmem:[%s381 + $0x28] sm:$0xff]
        %v451 = vld [vmem:[%s381 + $0x30] sm:$0xff]
        %v452 = vld [vmem:[%s381 + $0x38] sm:$0xff]
        %v453 = vld [vmem:[%s381 + $0x40] sm:$0xff]
        %v454 = vld [vmem:[%s381 + $0x48] sm:$0xff]
        %v455 = vld [vmem:[%s381 + $0x50] sm:$0xff]
        %v456 = vld [vmem:[%s381 + $0x58] sm:$0xff]
        %v457 = vld [vmem:[%s381 + $0x60] sm:$0xff]
        %v458 = vld [vmem:[%s381 + $0x68] sm:$0xff]
        %v459 = vld [vmem:[%s381 + $0x70] sm:$0xff]
        %v460 = vld [vmem:[%s381 + $0x78] sm:$0xff]
        %v461 = vld [vmem:[%s381 + $0x80] sm:$0xff]
        %v462 = vld [vmem:[%s381 + $0x88] sm:$0xff]
        %v463 = vld [vmem:[%s381 + $0x90] sm:$0xff]
        %v464 = vld [vmem:[%s381 + $0x98] sm:$0xff]
        %v465 = vld [vmem:[%s381 + $0xa0] sm:$0xff]
        %v466 = vld [vmem:[%s381 + $0xa8] sm:$0xff]
        %v467 = vld [vmem:[%s381 + $0xb0] sm:$0xff]
        %v468 = vld [vmem:[%s381 + $0xb8] sm:$0xff]
        %v469 = vld [vmem:[%s381 + $0xc0] sm:$0xff]
        %v470 = vld [vmem:[%s381 + $0xc8] sm:$0xff]
        %v471 = vld [vmem:[%s381 + $0xd0] sm:$0xff]
        %v472 = vld [vmem:[%s381 + $0xd8] sm:$0xff]
        %v473 = vld [vmem:[%s381 + $0xe0] sm:$0xff]
        %v474 = vld [vmem:[%s381 + $0xe8] sm:$0xff]
        %v475 = vld [vmem:[%s381 + $0xf0] sm:$0xff]
        %v476 = vld [vmem:[%s381 + $0xf8] sm:$0xff]
        %v477 = vld [vmem:[%s381 + $0x100] sm:$0xff]
        %v478 = vld [vmem:[%s381 + $0x108] sm:$0xff]
        %v479 = vld [vmem:[%s381 + $0x110] sm:$0xff]
        %v480 = vld [vmem:[%s381 + $0x118] sm:$0xff]
        %v481 = vld [vmem:[%s381 + $0x120] sm:$0xff]
        %v482 = vld [vmem:[%s381 + $0x128] sm:$0xff]
        %v483 = vld [vmem:[%s381 + $0x130] sm:$0xff]
        %v484 = vld [vmem:[%s381 + $0x138] sm:$0xff]
        %v485 = vld [vmem:[%s381 + $0x140] sm:$0xff]
        %v486 = vld [vmem:[%s381 + $0x148] sm:$0xff]
        %v487 = vld [vmem:[%s381 + $0x150] sm:$0xff]
        %v488 = vld [vmem:[%s381 + $0x158] sm:$0xff]
        %v489 = vld [vmem:[%s381 + $0x160] sm:$0xff]
        %v490 = vld [vmem:[%s381 + $0x168] sm:$0xff]
        %v491 = vld [vmem:[%s381 + $0x170] sm:$0xff]
        %v492 = vld [vmem:[%s381 + $0x178] sm:$0xff]
        %v493 = vld [vmem:[%s381 + $0x180] sm:$0xff]
        %v494 = vld [vmem:[%s381 + $0x188] sm:$0xff]
        %v495 = vld [vmem:[%s381 + $0x190] sm:$0xff]
        %v496 = vld [vmem:[%s381 + $0x198] sm:$0xff]
        %v497 = vld [vmem:[%s381 + $0x1a0] sm:$0xff]
        %v498 = vld [vmem:[%s381 + $0x1a8] sm:$0xff]
        %v499 = vld [vmem:[%s381 + $0x1b0] sm:$0xff]
        %v500 = vld [vmem:[%s381 + $0x1b8] sm:$0xff]
        %v501 = vld [vmem:[%s381 + $0x1c0] sm:$0xff]
        %v502 = vld [vmem:[%s381 + $0x1c8] sm:$0xff]
        %v503 = vld [vmem:[%s381 + $0x1d0] sm:$0xff]
        %v504 = vld [vmem:[%s381 + $0x1d8] sm:$0xff]
        %v505 = vld [vmem:[%s381 + $0x1e0] sm:$0xff]
        %v506 = vld [vmem:[%s381 + $0x1e8] sm:$0xff]
        %v507 = vld [vmem:[%s381 + $0x1f0] sm:$0xff]
        %v508 = vld [vmem:[%s381 + $0x1f8] sm:$0xff]
        %v509 = vpack.c.bf16 %v447, %v445
        %v510 = vpack.c.bf16 %v448, %v446
        %v511 = vpack.c.bf16 %v451, %v449
        %v512 = vpack.c.bf16 %v452, %v450
        %v513 = vpack.c.bf16 %v455, %v453
        %v514 = vpack.c.bf16 %v456, %v454
        %v515 = vpack.c.bf16 %v459, %v457
        %v516 = vpack.c.bf16 %v460, %v458
        %v517 = vpack.c.bf16 %v463, %v461
        %v518 = vpack.c.bf16 %v464, %v462
        %v519 = vpack.c.bf16 %v467, %v465
        %v520 = vpack.c.bf16 %v468, %v466
        %v521 = vpack.c.bf16 %v471, %v469
        %v522 = vpack.c.bf16 %v472, %v470
        %v523 = vpack.c.bf16 %v475, %v473
        %v524 = vpack.c.bf16 %v476, %v474
        %v525 = vpack.c.bf16 %v479, %v477
        %v526 = vpack.c.bf16 %v480, %v478
        %v527 = vpack.c.bf16 %v483, %v481
        %v528 = vpack.c.bf16 %v484, %v482
        %v529 = vpack.c.bf16 %v487, %v485
        %v530 = vpack.c.bf16 %v488, %v486
        %v531 = vpack.c.bf16 %v491, %v489
        %v532 = vpack.c.bf16 %v492, %v490
        %v533 = vpack.c.bf16 %v495, %v493
        %v534 = vpack.c.bf16 %v496, %v494
        %v535 = vpack.c.bf16 %v499, %v497
        %v536 = vpack.c.bf16 %v500, %v498
        %v537 = vpack.c.bf16 %v503, %v501
        %v538 = vpack.c.bf16 %v504, %v502
        %v539 = vpack.c.bf16 %v507, %v505
        %v540 = vpack.c.bf16 %v508, %v506
        %v541 = vld [vmem:[%s2] sm:$0xff]
        %v542 = vld [vmem:[%s2 + $0x8] sm:$0xff]
        %v543 = vld [vmem:[%s2 + $0x10] sm:$0xff]
        %v544 = vld [vmem:[%s2 + $0x18] sm:$0xff]
        %v545 = vld [vmem:[%s2 + $0x20] sm:$0xff]
        %v546 = vld [vmem:[%s2 + $0x28] sm:$0xff]
        %v547 = vld [vmem:[%s2 + $0x30] sm:$0xff]
        %v548 = vld [vmem:[%s2 + $0x38] sm:$0xff]
        %v549 = vld [vmem:[%s2 + $0x40] sm:$0xff]
        %v550 = vld [vmem:[%s2 + $0x48] sm:$0xff]
        %v551 = vld [vmem:[%s2 + $0x50] sm:$0xff]
        %v552 = vld [vmem:[%s2 + $0x58] sm:$0xff]
        %v553 = vld [vmem:[%s2 + $0x60] sm:$0xff]
        %v554 = vld [vmem:[%s2 + $0x68] sm:$0xff]
        %v555 = vld [vmem:[%s2 + $0x70] sm:$0xff]
        %v556 = vld [vmem:[%s2 + $0x78] sm:$0xff]
        %v557 = vld [vmem:[%s2 + $0x80] sm:$0xff]
        %v558 = vld [vmem:[%s2 + $0x88] sm:$0xff]
        %v559 = vld [vmem:[%s2 + $0x90] sm:$0xff]
        %v560 = vld [vmem:[%s2 + $0x98] sm:$0xff]
        %v561 = vld [vmem:[%s2 + $0xa0] sm:$0xff]
        %v562 = vld [vmem:[%s2 + $0xa8] sm:$0xff]
        %v563 = vld [vmem:[%s2 + $0xb0] sm:$0xff]
        %v564 = vld [vmem:[%s2 + $0xb8] sm:$0xff]
        %v565 = vld [vmem:[%s2 + $0xc0] sm:$0xff]
        %v566 = vld [vmem:[%s2 + $0xc8] sm:$0xff]
        %v567 = vld [vmem:[%s2 + $0xd0] sm:$0xff]
        %v568 = vld [vmem:[%s2 + $0xd8] sm:$0xff]
        %v569 = vld [vmem:[%s2 + $0xe0] sm:$0xff]
        %v570 = vld [vmem:[%s2 + $0xe8] sm:$0xff]
        %v571 = vld [vmem:[%s2 + $0xf0] sm:$0xff]
        %v572 = vld [vmem:[%s2 + $0xf8] sm:$0xff]
        %v573 = vld [vmem:[%s3] sm:$0x3]
        %v575 = vlaneseq
        %v576 = vshrl.u32 %v575, 7
        %v577 = vsub.s32 0, %v576
        %v578 = vrot.slane %v573, %v577
        %v579 = vlaneseq
        %v580 = vshrl.u32 %v579, 7
        %v581 = vsub.s32 1, %v580
        %v582 = vrot.slane %v573, %v581
        %v617 = vunpack.c.l.b16 %v541
        %v618 = vunpack.c.h.b16 %v541
        %v619 = vunpack.c.l.b16 %v542
        %v620 = vunpack.c.h.b16 %v542
        %v621 = vunpack.c.l.b16 %v543
        %v622 = vunpack.c.h.b16 %v543
        %v623 = vunpack.c.l.b16 %v544
        %v624 = vunpack.c.h.b16 %v544
        %v625 = vunpack.c.l.b16 %v545
        %v626 = vunpack.c.h.b16 %v545
        %v627 = vunpack.c.l.b16 %v546
        %v628 = vunpack.c.h.b16 %v546
        %v629 = vunpack.c.l.b16 %v547
        %v630 = vunpack.c.h.b16 %v547
        %v631 = vunpack.c.l.b16 %v548
        %v632 = vunpack.c.h.b16 %v548
        %v633 = vunpack.c.l.b16 %v549
        %v634 = vunpack.c.h.b16 %v549
        %v635 = vunpack.c.l.b16 %v550
        %v636 = vunpack.c.h.b16 %v550
        %v637 = vunpack.c.l.b16 %v551
        %v638 = vunpack.c.h.b16 %v551
        %v639 = vunpack.c.l.b16 %v552
        %v640 = vunpack.c.h.b16 %v552
        %v641 = vunpack.c.l.b16 %v553
        %v642 = vunpack.c.h.b16 %v553
        %v643 = vunpack.c.l.b16 %v554
        %v644 = vunpack.c.h.b16 %v554
        %v645 = vunpack.c.l.b16 %v555
        %v646 = vunpack.c.h.b16 %v555
        %v647 = vunpack.c.l.b16 %v556
        %v648 = vunpack.c.h.b16 %v556
        %v649 = vunpack.c.l.b16 %v557
        %v650 = vunpack.c.h.b16 %v557
        %v651 = vunpack.c.l.b16 %v558
        %v652 = vunpack.c.h.b16 %v558
        %v653 = vunpack.c.l.b16 %v559
        %v654 = vunpack.c.h.b16 %v559
        %v655 = vunpack.c.l.b16 %v560
        %v656 = vunpack.c.h.b16 %v560
        %v657 = vunpack.c.l.b16 %v561
        %v658 = vunpack.c.h.b16 %v561
        %v659 = vunpack.c.l.b16 %v562
        %v660 = vunpack.c.h.b16 %v562
        %v661 = vunpack.c.l.b16 %v563
        %v662 = vunpack.c.h.b16 %v563
        %v663 = vunpack.c.l.b16 %v564
        %v664 = vunpack.c.h.b16 %v564
        %v665 = vunpack.c.l.b16 %v565
        %v666 = vunpack.c.h.b16 %v565
        %v667 = vunpack.c.l.b16 %v566
        %v668 = vunpack.c.h.b16 %v566
        %v669 = vunpack.c.l.b16 %v567
        %v670 = vunpack.c.h.b16 %v567
        %v671 = vunpack.c.l.b16 %v568
        %v672 = vunpack.c.h.b16 %v568
        %v673 = vunpack.c.l.b16 %v569
        %v674 = vunpack.c.h.b16 %v569
        %v675 = vunpack.c.l.b16 %v570
        %v676 = vunpack.c.h.b16 %v570
        %v677 = vunpack.c.l.b16 %v571
        %v678 = vunpack.c.h.b16 %v571
        %v679 = vunpack.c.l.b16 %v572
        %v680 = vunpack.c.h.b16 %v572
        %v681 = vpack.c.b16 %v619, %v617
        %v682 = vpack.c.b16 %v620, %v618
        %v683 = vpack.c.b16 %v623, %v621
        %v684 = vpack.c.b16 %v624, %v622
        %v685 = vpack.c.b16 %v627, %v625
        %v686 = vpack.c.b16 %v628, %v626
        %v687 = vpack.c.b16 %v631, %v629
        %v688 = vpack.c.b16 %v632, %v630
        %v689 = vpack.c.b16 %v635, %v633
        %v690 = vpack.c.b16 %v636, %v634
        %v691 = vpack.c.b16 %v639, %v637
        %v692 = vpack.c.b16 %v640, %v638
        %v693 = vpack.c.b16 %v643, %v641
        %v694 = vpack.c.b16 %v644, %v642
        %v695 = vpack.c.b16 %v647, %v645
        %v696 = vpack.c.b16 %v648, %v646
        %v697 = vpack.c.b16 %v651, %v649
        %v698 = vpack.c.b16 %v652, %v650
        %v699 = vpack.c.b16 %v655, %v653
        %v700 = vpack.c.b16 %v656, %v654
        %v701 = vpack.c.b16 %v659, %v657
        %v702 = vpack.c.b16 %v660, %v658
        %v703 = vpack.c.b16 %v663, %v661
        %v704 = vpack.c.b16 %v664, %v662
        %v705 = vpack.c.b16 %v667, %v665
        %v706 = vpack.c.b16 %v668, %v666
        %v707 = vpack.c.b16 %v671, %v669
        %v708 = vpack.c.b16 %v672, %v670
        %v709 = vpack.c.b16 %v675, %v673
        %v710 = vpack.c.b16 %v676, %v674
        %v711 = vpack.c.b16 %v679, %v677
        %v712 = vpack.c.b16 %v680, %v678
        %745 = vmatprep.subr.bf16.mxu0 %v682
        %746 = vmatpush1.bf16.msra.mxu0 %v681
        %747 = vmatprep.subr.bf16.mxu0 %v684
        %748 = vmatpush1.bf16.msra.mxu0 %v683
        %749 = vmatprep.subr.bf16.mxu0 %v686
        %750 = vmatpush1.bf16.msra.mxu0 %v685
        %751 = vmatprep.subr.bf16.mxu0 %v688
        %752 = vmatpush1.bf16.msra.mxu0 %v687
        %753 = vmatprep.subr.bf16.mxu0 %v690
        %754 = vmatpush1.bf16.msra.mxu0 %v689
        %755 = vmatprep.subr.bf16.mxu0 %v692
        %756 = vmatpush1.bf16.msra.mxu0 %v691
        %757 = vmatprep.subr.bf16.mxu0 %v694
        %758 = vmatpush1.bf16.msra.mxu0 %v693
        %759 = vmatprep.subr.bf16.mxu0 %v696
        %760 = vmatpush1.bf16.msra.mxu0 %v695
        %761 = vmatprep.subr.bf16.mxu0 %v698
        %762 = vmatpush1.bf16.msra.mxu0 %v697
        %763 = vmatprep.subr.bf16.mxu0 %v700
        %764 = vmatpush1.bf16.msra.mxu0 %v699
        %765 = vmatprep.subr.bf16.mxu0 %v702
        %766 = vmatpush1.bf16.msra.mxu0 %v701
        %767 = vmatprep.subr.bf16.mxu0 %v704
        %768 = vmatpush1.bf16.msra.mxu0 %v703
        %769 = vmatprep.subr.bf16.mxu0 %v706
        %770 = vmatpush1.bf16.msra.mxu0 %v705
        %771 = vmatprep.subr.bf16.mxu0 %v708
        %772 = vmatpush1.bf16.msra.mxu0 %v707
        %773 = vmatprep.subr.bf16.mxu0 %v710
        %774 = vmatpush1.bf16.msra.mxu0 %v709
        %775 = vmatprep.subr.bf16.mxu0 %v712
        %776 = vmatpush1.bf16.msra.mxu0 %v711
        %777 = vmatprep.mubr.bf16.mxu0 %v510
        %778 = vmatmul.mubr.bf16.gmra.mrb[0].mxu0 %v509
        %v779 = vpop.f32.mrb[0].mxu0
        %v780 = vadd.f32 %v578, %v779
        %v781 = vpop.f32.mrb[0].mxu0
        %v782 = vadd.f32 %v582, %v781
        %v783 = vpop.f32.mrb[0].mxu0
        %v784 = vadd.f32 %v578, %v783
        %v785 = vpop.f32.mrb[0].mxu0
        %v786 = vadd.f32 %v582, %v785
        %787 = vmatprep.mubr.bf16.mxu0 %v512
        %788 = vmatmul.mubr.bf16.gmra.mrb[0].mxu0 %v511
        %v789 = vpop.f32.mrb[0].mxu0
        %v790 = vadd.f32 %v578, %v789
        %v791 = vpop.f32.mrb[0].mxu0
        %v792 = vadd.f32 %v582, %v791
        %v793 = vpop.f32.mrb[0].mxu0
        %v794 = vadd.f32 %v578, %v793
        %v795 = vpop.f32.mrb[0].mxu0
        %v796 = vadd.f32 %v582, %v795
        %797 = vmatprep.mubr.bf16.mxu0 %v514
        %798 = vmatmul.mubr.bf16.gmra.mrb[0].mxu0 %v513
        %v799 = vpop.f32.mrb[0].mxu0
        %v800 = vadd.f32 %v578, %v799
        %v801 = vpop.f32.mrb[0].mxu0
        %v802 = vadd.f32 %v582, %v801
        %v803 = vpop.f32.mrb[0].mxu0
        %v804 = vadd.f32 %v578, %v803
        %v805 = vpop.f32.mrb[0].mxu0
        %v806 = vadd.f32 %v582, %v805
        %807 = vmatprep.mubr.bf16.mxu0 %v516
        %808 = vmatmul.mubr.bf16.gmra.mrb[0].mxu0 %v515
        %v809 = vpop.f32.mrb[0].mxu0
        %v810 = vadd.f32 %v578, %v809
        %v811 = vpop.f32.mrb[0].mxu0
        %v812 = vadd.f32 %v582, %v811
        %v813 = vpop.f32.mrb[0].mxu0
        %v814 = vadd.f32 %v578, %v813
        %v815 = vpop.f32.mrb[0].mxu0
        %v816 = vadd.f32 %v582, %v815
        %817 = vmatprep.mubr.bf16.mxu0 %v518
        %818 = vmatmul.mubr.bf16.gmra.mrb[0].mxu0 %v517
        %v819 = vpop.f32.mrb[0].mxu0
        %v820 = vadd.f32 %v578, %v819
        %v821 = vpop.f32.mrb[0].mxu0
        %v822 = vadd.f32 %v582, %v821
        %v823 = vpop.f32.mrb[0].mxu0
        %v824 = vadd.f32 %v578, %v823
        %v825 = vpop.f32.mrb[0].mxu0
        %v826 = vadd.f32 %v582, %v825
        %827 = vmatprep.mubr.bf16.mxu0 %v520
        %828 = vmatmul.mubr.bf16.gmra.mrb[0].mxu0 %v519
        %v829 = vpop.f32.mrb[0].mxu0
        %v830 = vadd.f32 %v578, %v829
        %v831 = vpop.f32.mrb[0].mxu0
        %v832 = vadd.f32 %v582, %v831
        %v833 = vpop.f32.mrb[0].mxu0
        %v834 = vadd.f32 %v578, %v833
        %v835 = vpop.f32.mrb[0].mxu0
        %v836 = vadd.f32 %v582, %v835
        %837 = vmatprep.mubr.bf16.mxu0 %v522
        %838 = vmatmul.mubr.bf16.gmra.mrb[0].mxu0 %v521
        %v839 = vpop.f32.mrb[0].mxu0
        %v840 = vadd.f32 %v578, %v839
        %v841 = vpop.f32.mrb[0].mxu0
        %v842 = vadd.f32 %v582, %v841
        %v843 = vpop.f32.mrb[0].mxu0
        %v844 = vadd.f32 %v578, %v843
        %v845 = vpop.f32.mrb[0].mxu0
        %v846 = vadd.f32 %v582, %v845
        %847 = vmatprep.mubr.bf16.mxu0 %v524
        %848 = vmatmul.mubr.bf16.gmra.mrb[0].mxu0 %v523
        %v849 = vpop.f32.mrb[0].mxu0
        %v850 = vadd.f32 %v578, %v849
        %v851 = vpop.f32.mrb[0].mxu0
        %v852 = vadd.f32 %v582, %v851
        %v853 = vpop.f32.mrb[0].mxu0
        %v854 = vadd.f32 %v578, %v853
        %v855 = vpop.f32.mrb[0].mxu0
        %v856 = vadd.f32 %v582, %v855
        %857 = vmatprep.mubr.bf16.mxu0 %v526
        %858 = vmatmul.mubr.bf16.gmra.mrb[0].mxu0 %v525
        %v859 = vpop.f32.mrb[0].mxu0
        %v860 = vadd.f32 %v578, %v859
        %v861 = vpop.f32.mrb[0].mxu0
        %v862 = vadd.f32 %v582, %v861
        %v863 = vpop.f32.mrb[0].mxu0
        %v864 = vadd.f32 %v578, %v863
        %v865 = vpop.f32.mrb[0].mxu0
        %v866 = vadd.f32 %v582, %v865
        %867 = vmatprep.mubr.bf16.mxu0 %v528
        %868 = vmatmul.mubr.bf16.gmra.mrb[0].mxu0 %v527
        %v869 = vpop.f32.mrb[0].mxu0
        %v870 = vadd.f32 %v578, %v869
        %v871 = vpop.f32.mrb[0].mxu0
        %v872 = vadd.f32 %v582, %v871
        %v873 = vpop.f32.mrb[0].mxu0
        %v874 = vadd.f32 %v578, %v873
        %v875 = vpop.f32.mrb[0].mxu0
        %v876 = vadd.f32 %v582, %v875
        %877 = vmatprep.mubr.bf16.mxu0 %v530
        %878 = vmatmul.mubr.bf16.gmra.mrb[0].mxu0 %v529
        %v879 = vpop.f32.mrb[0].mxu0
        %v880 = vadd.f32 %v578, %v879
        %v881 = vpop.f32.mrb[0].mxu0
        %v882 = vadd.f32 %v582, %v881
        %v883 = vpop.f32.mrb[0].mxu0
        %v884 = vadd.f32 %v578, %v883
        %v885 = vpop.f32.mrb[0].mxu0
        %v886 = vadd.f32 %v582, %v885
        %887 = vmatprep.mubr.bf16.mxu0 %v532
        %888 = vmatmul.mubr.bf16.gmra.mrb[0].mxu0 %v531
        %v889 = vpop.f32.mrb[0].mxu0
        %v890 = vadd.f32 %v578, %v889
        %v891 = vpop.f32.mrb[0].mxu0
        %v892 = vadd.f32 %v582, %v891
        %v893 = vpop.f32.mrb[0].mxu0
        %v894 = vadd.f32 %v578, %v893
        %v895 = vpop.f32.mrb[0].mxu0
        %v896 = vadd.f32 %v582, %v895
        %897 = vmatprep.mubr.bf16.mxu0 %v534
        %898 = vmatmul.mubr.bf16.gmra.mrb[0].mxu0 %v533
        %v899 = vpop.f32.mrb[0].mxu0
        %v900 = vadd.f32 %v578, %v899
        %v901 = vpop.f32.mrb[0].mxu0
        %v902 = vadd.f32 %v582, %v901
        %v903 = vpop.f32.mrb[0].mxu0
        %v904 = vadd.f32 %v578, %v903
        %v905 = vpop.f32.mrb[0].mxu0
        %v906 = vadd.f32 %v582, %v905
        %907 = vmatprep.mubr.bf16.mxu0 %v536
        %908 = vmatmul.mubr.bf16.gmra.mrb[0].mxu0 %v535
        %v909 = vpop.f32.mrb[0].mxu0
        %v910 = vadd.f32 %v578, %v909
        %v911 = vpop.f32.mrb[0].mxu0
        %v912 = vadd.f32 %v582, %v911
        %v913 = vpop.f32.mrb[0].mxu0
        %v914 = vadd.f32 %v578, %v913
        %v915 = vpop.f32.mrb[0].mxu0
        %v916 = vadd.f32 %v582, %v915
        %917 = vmatprep.mubr.bf16.mxu0 %v538
        %918 = vmatmul.mubr.bf16.gmra.mrb[0].mxu0 %v537
        %v919 = vpop.f32.mrb[0].mxu0
        %v920 = vadd.f32 %v578, %v919
        %v921 = vpop.f32.mrb[0].mxu0
        %v922 = vadd.f32 %v582, %v921
        %v923 = vpop.f32.mrb[0].mxu0
        %v924 = vadd.f32 %v578, %v923
        %v925 = vpop.f32.mrb[0].mxu0
        %v926 = vadd.f32 %v582, %v925
        %927 = vmatprep.mubr.bf16.mxu0 %v540
        %928 = vmatmul.mubr.bf16.gmra.mrb[0].mxu0 %v539
        %v929 = vpop.f32.mrb[0].mxu0
        %v930 = vadd.f32 %v578, %v929
        %v931 = vpop.f32.mrb[0].mxu0
        %v932 = vadd.f32 %v582, %v931
        %v933 = vpop.f32.mrb[0].mxu0
        %v934 = vadd.f32 %v578, %v933
        %v935 = vpop.f32.mrb[0].mxu0
        %v936 = vadd.f32 %v582, %v935
        %937 = vdwg.mxu0
        %v938 = vmax.f32 %v780, 0.0
        %v939 = vmax.f32 %v782, 0.0
        %v940 = vmax.f32 %v784, 0.0
        %v941 = vmax.f32 %v786, 0.0
        %v942 = vmax.f32 %v790, 0.0
        %v943 = vmax.f32 %v792, 0.0
        %v944 = vmax.f32 %v794, 0.0
        %v945 = vmax.f32 %v796, 0.0
        %v946 = vmax.f32 %v800, 0.0
        %v947 = vmax.f32 %v802, 0.0
        %v948 = vmax.f32 %v804, 0.0
        %v949 = vmax.f32 %v806, 0.0
        %v950 = vmax.f32 %v810, 0.0
        %v951 = vmax.f32 %v812, 0.0
        %v952 = vmax.f32 %v814, 0.0
        %v953 = vmax.f32 %v816, 0.0
        %v954 = vmax.f32 %v820, 0.0
        %v955 = vmax.f32 %v822, 0.0
        %v956 = vmax.f32 %v824, 0.0
        %v957 = vmax.f32 %v826, 0.0
        %v958 = vmax.f32 %v830, 0.0
        %v959 = vmax.f32 %v832, 0.0
        %v960 = vmax.f32 %v834, 0.0
        %v961 = vmax.f32 %v836, 0.0
        %v962 = vmax.f32 %v840, 0.0
        %v963 = vmax.f32 %v842, 0.0
        %v964 = vmax.f32 %v844, 0.0
        %v965 = vmax.f32 %v846, 0.0
        %v966 = vmax.f32 %v850, 0.0
        %v967 = vmax.f32 %v852, 0.0
        %v968 = vmax.f32 %v854, 0.0
        %v969 = vmax.f32 %v856, 0.0
        %v970 = vmax.f32 %v860, 0.0
        %v971 = vmax.f32 %v862, 0.0
        %v972 = vmax.f32 %v864, 0.0
        %v973 = vmax.f32 %v866, 0.0
        %v974 = vmax.f32 %v870, 0.0
        %v975 = vmax.f32 %v872, 0.0
        %v976 = vmax.f32 %v874, 0.0
        %v977 = vmax.f32 %v876, 0.0
        %v978 = vmax.f32 %v880, 0.0
        %v979 = vmax.f32 %v882, 0.0
        %v980 = vmax.f32 %v884, 0.0
        %v981 = vmax.f32 %v886, 0.0
        %v982 = vmax.f32 %v890, 0.0
        %v983 = vmax.f32 %v892, 0.0
        %v984 = vmax.f32 %v894, 0.0
        %v985 = vmax.f32 %v896, 0.0
        %v986 = vmax.f32 %v900, 0.0
        %v987 = vmax.f32 %v902, 0.0
        %v988 = vmax.f32 %v904, 0.0
        %v989 = vmax.f32 %v906, 0.0
        %v990 = vmax.f32 %v910, 0.0
        %v991 = vmax.f32 %v912, 0.0
        %v992 = vmax.f32 %v914, 0.0
        %v993 = vmax.f32 %v916, 0.0
        %v994 = vmax.f32 %v920, 0.0
        %v995 = vmax.f32 %v922, 0.0
        %v996 = vmax.f32 %v924, 0.0
        %v997 = vmax.f32 %v926, 0.0
        %v998 = vmax.f32 %v930, 0.0
        %v999 = vmax.f32 %v932, 0.0
        %v1000 = vmax.f32 %v934, 0.0
        %v1001 = vmax.f32 %v936, 0.0
        %v1002 = vpack.c.bf16 %v940, %v938
        %v1003 = vpack.c.bf16 %v941, %v939
        %v1004 = vpack.c.bf16 %v944, %v942
        %v1005 = vpack.c.bf16 %v945, %v943
        %v1006 = vpack.c.bf16 %v948, %v946
        %v1007 = vpack.c.bf16 %v949, %v947
        %v1008 = vpack.c.bf16 %v952, %v950
        %v1009 = vpack.c.bf16 %v953, %v951
        %v1010 = vpack.c.bf16 %v956, %v954
        %v1011 = vpack.c.bf16 %v957, %v955
        %v1012 = vpack.c.bf16 %v960, %v958
        %v1013 = vpack.c.bf16 %v961, %v959
        %v1014 = vpack.c.bf16 %v964, %v962
        %v1015 = vpack.c.bf16 %v965, %v963
        %v1016 = vpack.c.bf16 %v968, %v966
        %v1017 = vpack.c.bf16 %v969, %v967
        %v1018 = vpack.c.bf16 %v972, %v970
        %v1019 = vpack.c.bf16 %v973, %v971
        %v1020 = vpack.c.bf16 %v976, %v974
        %v1021 = vpack.c.bf16 %v977, %v975
        %v1022 = vpack.c.bf16 %v980, %v978
        %v1023 = vpack.c.bf16 %v981, %v979
        %v1024 = vpack.c.bf16 %v984, %v982
        %v1025 = vpack.c.bf16 %v985, %v983
        %v1026 = vpack.c.bf16 %v988, %v986
        %v1027 = vpack.c.bf16 %v989, %v987
        %v1028 = vpack.c.bf16 %v992, %v990
        %v1029 = vpack.c.bf16 %v993, %v991
        %v1030 = vpack.c.bf16 %v996, %v994
        %v1031 = vpack.c.bf16 %v997, %v995
        %v1032 = vpack.c.bf16 %v1000, %v998
        %v1033 = vpack.c.bf16 %v1001, %v999
        %v1034 = vld [vmem:[%s4] sm:$0xff]
        %v1035 = vld [vmem:[%s4 + $0x8] sm:$0xff]
        %v1036 = vld [vmem:[%s4 + $0x10] sm:$0xff]
        %v1037 = vld [vmem:[%s4 + $0x18] sm:$0xff]
        %v1038 = vld [vmem:[%s4 + $0x20] sm:$0xff]
        %v1039 = vld [vmem:[%s4 + $0x28] sm:$0xff]
        %v1040 = vld [vmem:[%s4 + $0x30] sm:$0xff]
        %v1041 = vld [vmem:[%s4 + $0x38] sm:$0xff]
        %v1042 = vld [vmem:[%s4 + $0x40] sm:$0xff]
        %v1043 = vld [vmem:[%s4 + $0x48] sm:$0xff]
        %v1044 = vld [vmem:[%s4 + $0x50] sm:$0xff]
        %v1045 = vld [vmem:[%s4 + $0x58] sm:$0xff]
        %v1046 = vld [vmem:[%s4 + $0x60] sm:$0xff]
        %v1047 = vld [vmem:[%s4 + $0x68] sm:$0xff]
        %v1048 = vld [vmem:[%s4 + $0x70] sm:$0xff]
        %v1049 = vld [vmem:[%s4 + $0x78] sm:$0xff]
        %v1050 = vld [vmem:[%s4 + $0x80] sm:$0xff]
        %v1051 = vld [vmem:[%s4 + $0x88] sm:$0xff]
        %v1052 = vld [vmem:[%s4 + $0x90] sm:$0xff]
        %v1053 = vld [vmem:[%s4 + $0x98] sm:$0xff]
        %v1054 = vld [vmem:[%s4 + $0xa0] sm:$0xff]
        %v1055 = vld [vmem:[%s4 + $0xa8] sm:$0xff]
        %v1056 = vld [vmem:[%s4 + $0xb0] sm:$0xff]
        %v1057 = vld [vmem:[%s4 + $0xb8] sm:$0xff]
        %v1058 = vld [vmem:[%s4 + $0xc0] sm:$0xff]
        %v1059 = vld [vmem:[%s4 + $0xc8] sm:$0xff]
        %v1060 = vld [vmem:[%s4 + $0xd0] sm:$0xff]
        %v1061 = vld [vmem:[%s4 + $0xd8] sm:$0xff]
        %v1062 = vld [vmem:[%s4 + $0xe0] sm:$0xff]
        %v1063 = vld [vmem:[%s4 + $0xe8] sm:$0xff]
        %v1064 = vld [vmem:[%s4 + $0xf0] sm:$0xff]
        %v1065 = vld [vmem:[%s4 + $0xf8] sm:$0xff]
        %v1066 = vld [vmem:[%s5] sm:$0x3]
        %v1068 = vlaneseq
        %v1069 = vshrl.u32 %v1068, 7
        %v1070 = vsub.s32 0, %v1069
        %v1071 = vrot.slane %v1066, %v1070
        %v1072 = vlaneseq
        %v1073 = vshrl.u32 %v1072, 7
        %v1074 = vsub.s32 1, %v1073
        %v1075 = vrot.slane %v1066, %v1074
        %v1110 = vunpack.c.l.b16 %v1034
        %v1111 = vunpack.c.h.b16 %v1034
        %v1112 = vunpack.c.l.b16 %v1035
        %v1113 = vunpack.c.h.b16 %v1035
        %v1114 = vunpack.c.l.b16 %v1036
        %v1115 = vunpack.c.h.b16 %v1036
        %v1116 = vunpack.c.l.b16 %v1037
        %v1117 = vunpack.c.h.b16 %v1037
        %v1118 = vunpack.c.l.b16 %v1038
        %v1119 = vunpack.c.h.b16 %v1038
        %v1120 = vunpack.c.l.b16 %v1039
        %v1121 = vunpack.c.h.b16 %v1039
        %v1122 = vunpack.c.l.b16 %v1040
        %v1123 = vunpack.c.h.b16 %v1040
        %v1124 = vunpack.c.l.b16 %v1041
        %v1125 = vunpack.c.h.b16 %v1041
        %v1126 = vunpack.c.l.b16 %v1042
        %v1127 = vunpack.c.h.b16 %v1042
        %v1128 = vunpack.c.l.b16 %v1043
        %v1129 = vunpack.c.h.b16 %v1043
        %v1130 = vunpack.c.l.b16 %v1044
        %v1131 = vunpack.c.h.b16 %v1044
        %v1132 = vunpack.c.l.b16 %v1045
        %v1133 = vunpack.c.h.b16 %v1045
        %v1134 = vunpack.c.l.b16 %v1046
        %v1135 = vunpack.c.h.b16 %v1046
        %v1136 = vunpack.c.l.b16 %v1047
        %v1137 = vunpack.c.h.b16 %v1047
        %v1138 = vunpack.c.l.b16 %v1048
        %v1139 = vunpack.c.h.b16 %v1048
        %v1140 = vunpack.c.l.b16 %v1049
        %v1141 = vunpack.c.h.b16 %v1049
        %v1142 = vunpack.c.l.b16 %v1050
        %v1143 = vunpack.c.h.b16 %v1050
        %v1144 = vunpack.c.l.b16 %v1051
        %v1145 = vunpack.c.h.b16 %v1051
        %v1146 = vunpack.c.l.b16 %v1052
        %v1147 = vunpack.c.h.b16 %v1052
        %v1148 = vunpack.c.l.b16 %v1053
        %v1149 = vunpack.c.h.b16 %v1053
        %v1150 = vunpack.c.l.b16 %v1054
        %v1151 = vunpack.c.h.b16 %v1054
        %v1152 = vunpack.c.l.b16 %v1055
        %v1153 = vunpack.c.h.b16 %v1055
        %v1154 = vunpack.c.l.b16 %v1056
        %v1155 = vunpack.c.h.b16 %v1056
        %v1156 = vunpack.c.l.b16 %v1057
        %v1157 = vunpack.c.h.b16 %v1057
        %v1158 = vunpack.c.l.b16 %v1058
        %v1159 = vunpack.c.h.b16 %v1058
        %v1160 = vunpack.c.l.b16 %v1059
        %v1161 = vunpack.c.h.b16 %v1059
        %v1162 = vunpack.c.l.b16 %v1060
        %v1163 = vunpack.c.h.b16 %v1060
        %v1164 = vunpack.c.l.b16 %v1061
        %v1165 = vunpack.c.h.b16 %v1061
        %v1166 = vunpack.c.l.b16 %v1062
        %v1167 = vunpack.c.h.b16 %v1062
        %v1168 = vunpack.c.l.b16 %v1063
        %v1169 = vunpack.c.h.b16 %v1063
        %v1170 = vunpack.c.l.b16 %v1064
        %v1171 = vunpack.c.h.b16 %v1064
        %v1172 = vunpack.c.l.b16 %v1065
        %v1173 = vunpack.c.h.b16 %v1065
        %v1174 = vpack.c.b16 %v1112, %v1110
        %v1175 = vpack.c.b16 %v1113, %v1111
        %v1176 = vpack.c.b16 %v1116, %v1114
        %v1177 = vpack.c.b16 %v1117, %v1115
        %v1178 = vpack.c.b16 %v1120, %v1118
        %v1179 = vpack.c.b16 %v1121, %v1119
        %v1180 = vpack.c.b16 %v1124, %v1122
        %v1181 = vpack.c.b16 %v1125, %v1123
        %v1182 = vpack.c.b16 %v1128, %v1126
        %v1183 = vpack.c.b16 %v1129, %v1127
        %v1184 = vpack.c.b16 %v1132, %v1130
        %v1185 = vpack.c.b16 %v1133, %v1131
        %v1186 = vpack.c.b16 %v1136, %v1134
        %v1187 = vpack.c.b16 %v1137, %v1135
        %v1188 = vpack.c.b16 %v1140, %v1138
        %v1189 = vpack.c.b16 %v1141, %v1139
        %v1190 = vpack.c.b16 %v1144, %v1142
        %v1191 = vpack.c.b16 %v1145, %v1143
        %v1192 = vpack.c.b16 %v1148, %v1146
        %v1193 = vpack.c.b16 %v1149, %v1147
        %v1194 = vpack.c.b16 %v1152, %v1150
        %v1195 = vpack.c.b16 %v1153, %v1151
        %v1196 = vpack.c.b16 %v1156, %v1154
        %v1197 = vpack.c.b16 %v1157, %v1155
        %v1198 = vpack.c.b16 %v1160, %v1158
        %v1199 = vpack.c.b16 %v1161, %v1159
        %v1200 = vpack.c.b16 %v1164, %v1162
        %v1201 = vpack.c.b16 %v1165, %v1163
        %v1202 = vpack.c.b16 %v1168, %v1166
        %v1203 = vpack.c.b16 %v1169, %v1167
        %v1204 = vpack.c.b16 %v1172, %v1170
        %v1205 = vpack.c.b16 %v1173, %v1171
        %1238 = vmatprep.subr.bf16.mxu0 %v1175
        %1239 = vmatpush1.bf16.msra.mxu0 %v1174
        %1240 = vmatprep.subr.bf16.mxu0 %v1177
        %1241 = vmatpush1.bf16.msra.mxu0 %v1176
        %1242 = vmatprep.subr.bf16.mxu0 %v1179
        %1243 = vmatpush1.bf16.msra.mxu0 %v1178
        %1244 = vmatprep.subr.bf16.mxu0 %v1181
        %1245 = vmatpush1.bf16.msra.mxu0 %v1180
        %1246 = vmatprep.subr.bf16.mxu0 %v1183
        %1247 = vmatpush1.bf16.msra.mxu0 %v1182
        %1248 = vmatprep.subr.bf16.mxu0 %v1185
        %1249 = vmatpush1.bf16.msra.mxu0 %v1184
        %1250 = vmatprep.subr.bf16.mxu0 %v1187
        %1251 = vmatpush1.bf16.msra.mxu0 %v1186
        %1252 = vmatprep.subr.bf16.mxu0 %v1189
        %1253 = vmatpush1.bf16.msra.mxu0 %v1188
        %1254 = vmatprep.subr.bf16.mxu0 %v1191
        %1255 = vmatpush1.bf16.msra.mxu0 %v1190
        %1256 = vmatprep.subr.bf16.mxu0 %v1193
        %1257 = vmatpush1.bf16.msra.mxu0 %v1192
        %1258 = vmatprep.subr.bf16.mxu0 %v1195
        %1259 = vmatpush1.bf16.msra.mxu0 %v1194
        %1260 = vmatprep.subr.bf16.mxu0 %v1197
        %1261 = vmatpush1.bf16.msra.mxu0 %v1196
        %1262 = vmatprep.subr.bf16.mxu0 %v1199
        %1263 = vmatpush1.bf16.msra.mxu0 %v1198
        %1264 = vmatprep.subr.bf16.mxu0 %v1201
        %1265 = vmatpush1.bf16.msra.mxu0 %v1200
        %1266 = vmatprep.subr.bf16.mxu0 %v1203
        %1267 = vmatpush1.bf16.msra.mxu0 %v1202
        %1268 = vmatprep.subr.bf16.mxu0 %v1205
        %1269 = vmatpush1.bf16.msra.mxu0 %v1204
        %1270 = vmatprep.mubr.bf16.mxu0 %v1003
        %1271 = vmatmul.mubr.bf16.gmra.mrb[0].mxu0 %v1002
        %v1272 = vpop.f32.mrb[0].mxu0
        %v1273 = vadd.f32 %v1071, %v1272
        %v1274 = vpop.f32.mrb[0].mxu0
        %v1275 = vadd.f32 %v1075, %v1274
        %v1276 = vpop.f32.mrb[0].mxu0
        %v1277 = vadd.f32 %v1071, %v1276
        %v1278 = vpop.f32.mrb[0].mxu0
        %v1279 = vadd.f32 %v1075, %v1278
        %1280 = vmatprep.mubr.bf16.mxu0 %v1005
        %1281 = vmatmul.mubr.bf16.gmra.mrb[0].mxu0 %v1004
        %v1282 = vpop.f32.mrb[0].mxu0
        %v1283 = vadd.f32 %v1071, %v1282
        %v1284 = vpop.f32.mrb[0].mxu0
        %v1285 = vadd.f32 %v1075, %v1284
        %v1286 = vpop.f32.mrb[0].mxu0
        %v1287 = vadd.f32 %v1071, %v1286
        %v1288 = vpop.f32.mrb[0].mxu0
        %v1289 = vadd.f32 %v1075, %v1288
        %1290 = vmatprep.mubr.bf16.mxu0 %v1007
        %1291 = vmatmul.mubr.bf16.gmra.mrb[0].mxu0 %v1006
        %v1292 = vpop.f32.mrb[0].mxu0
        %v1293 = vadd.f32 %v1071, %v1292
        %v1294 = vpop.f32.mrb[0].mxu0
        %v1295 = vadd.f32 %v1075, %v1294
        %v1296 = vpop.f32.mrb[0].mxu0
        %v1297 = vadd.f32 %v1071, %v1296
        %v1298 = vpop.f32.mrb[0].mxu0
        %v1299 = vadd.f32 %v1075, %v1298
        %1300 = vmatprep.mubr.bf16.mxu0 %v1009
        %1301 = vmatmul.mubr.bf16.gmra.mrb[0].mxu0 %v1008
        %v1302 = vpop.f32.mrb[0].mxu0
        %v1303 = vadd.f32 %v1071, %v1302
        %v1304 = vpop.f32.mrb[0].mxu0
        %v1305 = vadd.f32 %v1075, %v1304
        %v1306 = vpop.f32.mrb[0].mxu0
        %v1307 = vadd.f32 %v1071, %v1306
        %v1308 = vpop.f32.mrb[0].mxu0
        %v1309 = vadd.f32 %v1075, %v1308
        %1310 = vmatprep.mubr.bf16.mxu0 %v1011
        %1311 = vmatmul.mubr.bf16.gmra.mrb[0].mxu0 %v1010
        %v1312 = vpop.f32.mrb[0].mxu0
        %v1313 = vadd.f32 %v1071, %v1312
        %v1314 = vpop.f32.mrb[0].mxu0
        %v1315 = vadd.f32 %v1075, %v1314
        %v1316 = vpop.f32.mrb[0].mxu0
        %v1317 = vadd.f32 %v1071, %v1316
        %v1318 = vpop.f32.mrb[0].mxu0
        %v1319 = vadd.f32 %v1075, %v1318
        %1320 = vmatprep.mubr.bf16.mxu0 %v1013
        %1321 = vmatmul.mubr.bf16.gmra.mrb[0].mxu0 %v1012
        %v1322 = vpop.f32.mrb[0].mxu0
        %v1323 = vadd.f32 %v1071, %v1322
        %v1324 = vpop.f32.mrb[0].mxu0
        %v1325 = vadd.f32 %v1075, %v1324
        %v1326 = vpop.f32.mrb[0].mxu0
        %v1327 = vadd.f32 %v1071, %v1326
        %v1328 = vpop.f32.mrb[0].mxu0
        %v1329 = vadd.f32 %v1075, %v1328
        %1330 = vmatprep.mubr.bf16.mxu0 %v1015
        %1331 = vmatmul.mubr.bf16.gmra.mrb[0].mxu0 %v1014
        %v1332 = vpop.f32.mrb[0].mxu0
        %v1333 = vadd.f32 %v1071, %v1332
        %v1334 = vpop.f32.mrb[0].mxu0
        %v1335 = vadd.f32 %v1075, %v1334
        %v1336 = vpop.f32.mrb[0].mxu0
        %v1337 = vadd.f32 %v1071, %v1336
        %v1338 = vpop.f32.mrb[0].mxu0
        %v1339 = vadd.f32 %v1075, %v1338
        %1340 = vmatprep.mubr.bf16.mxu0 %v1017
        %1341 = vmatmul.mubr.bf16.gmra.mrb[0].mxu0 %v1016
        %v1342 = vpop.f32.mrb[0].mxu0
        %v1343 = vadd.f32 %v1071, %v1342
        %v1344 = vpop.f32.mrb[0].mxu0
        %v1345 = vadd.f32 %v1075, %v1344
        %v1346 = vpop.f32.mrb[0].mxu0
        %v1347 = vadd.f32 %v1071, %v1346
        %v1348 = vpop.f32.mrb[0].mxu0
        %v1349 = vadd.f32 %v1075, %v1348
        %1350 = vmatprep.mubr.bf16.mxu0 %v1019
        %1351 = vmatmul.mubr.bf16.gmra.mrb[0].mxu0 %v1018
        %v1352 = vpop.f32.mrb[0].mxu0
        %v1353 = vadd.f32 %v1071, %v1352
        %v1354 = vpop.f32.mrb[0].mxu0
        %v1355 = vadd.f32 %v1075, %v1354
        %v1356 = vpop.f32.mrb[0].mxu0
        %v1357 = vadd.f32 %v1071, %v1356
        %v1358 = vpop.f32.mrb[0].mxu0
        %v1359 = vadd.f32 %v1075, %v1358
        %1360 = vmatprep.mubr.bf16.mxu0 %v1021
        %1361 = vmatmul.mubr.bf16.gmra.mrb[0].mxu0 %v1020
        %v1362 = vpop.f32.mrb[0].mxu0
        %v1363 = vadd.f32 %v1071, %v1362
        %v1364 = vpop.f32.mrb[0].mxu0
        %v1365 = vadd.f32 %v1075, %v1364
        %v1366 = vpop.f32.mrb[0].mxu0
        %v1367 = vadd.f32 %v1071, %v1366
        %v1368 = vpop.f32.mrb[0].mxu0
        %v1369 = vadd.f32 %v1075, %v1368
        %1370 = vmatprep.mubr.bf16.mxu0 %v1023
        %1371 = vmatmul.mubr.bf16.gmra.mrb[0].mxu0 %v1022
        %v1372 = vpop.f32.mrb[0].mxu0
        %v1373 = vadd.f32 %v1071, %v1372
        %v1374 = vpop.f32.mrb[0].mxu0
        %v1375 = vadd.f32 %v1075, %v1374
        %v1376 = vpop.f32.mrb[0].mxu0
        %v1377 = vadd.f32 %v1071, %v1376
        %v1378 = vpop.f32.mrb[0].mxu0
        %v1379 = vadd.f32 %v1075, %v1378
        %1380 = vmatprep.mubr.bf16.mxu0 %v1025
        %1381 = vmatmul.mubr.bf16.gmra.mrb[0].mxu0 %v1024
        %v1382 = vpop.f32.mrb[0].mxu0
        %v1383 = vadd.f32 %v1071, %v1382
        %v1384 = vpop.f32.mrb[0].mxu0
        %v1385 = vadd.f32 %v1075, %v1384
        %v1386 = vpop.f32.mrb[0].mxu0
        %v1387 = vadd.f32 %v1071, %v1386
        %v1388 = vpop.f32.mrb[0].mxu0
        %v1389 = vadd.f32 %v1075, %v1388
        %1390 = vmatprep.mubr.bf16.mxu0 %v1027
        %1391 = vmatmul.mubr.bf16.gmra.mrb[0].mxu0 %v1026
        %v1392 = vpop.f32.mrb[0].mxu0
        %v1393 = vadd.f32 %v1071, %v1392
        %v1394 = vpop.f32.mrb[0].mxu0
        %v1395 = vadd.f32 %v1075, %v1394
        %v1396 = vpop.f32.mrb[0].mxu0
        %v1397 = vadd.f32 %v1071, %v1396
        %v1398 = vpop.f32.mrb[0].mxu0
        %v1399 = vadd.f32 %v1075, %v1398
        %1400 = vmatprep.mubr.bf16.mxu0 %v1029
        %1401 = vmatmul.mubr.bf16.gmra.mrb[0].mxu0 %v1028
        %v1402 = vpop.f32.mrb[0].mxu0
        %v1403 = vadd.f32 %v1071, %v1402
        %v1404 = vpop.f32.mrb[0].mxu0
        %v1405 = vadd.f32 %v1075, %v1404
        %v1406 = vpop.f32.mrb[0].mxu0
        %v1407 = vadd.f32 %v1071, %v1406
        %v1408 = vpop.f32.mrb[0].mxu0
        %v1409 = vadd.f32 %v1075, %v1408
        %1410 = vmatprep.mubr.bf16.mxu0 %v1031
        %1411 = vmatmul.mubr.bf16.gmra.mrb[0].mxu0 %v1030
        %v1412 = vpop.f32.mrb[0].mxu0
        %v1413 = vadd.f32 %v1071, %v1412
        %v1414 = vpop.f32.mrb[0].mxu0
        %v1415 = vadd.f32 %v1075, %v1414
        %v1416 = vpop.f32.mrb[0].mxu0
        %v1417 = vadd.f32 %v1071, %v1416
        %v1418 = vpop.f32.mrb[0].mxu0
        %v1419 = vadd.f32 %v1075, %v1418
        %1420 = vmatprep.mubr.bf16.mxu0 %v1033
        %1421 = vmatmul.mubr.bf16.gmra.mrb[0].mxu0 %v1032
        %v1422 = vpop.f32.mrb[0].mxu0
        %v1423 = vadd.f32 %v1071, %v1422
        %v1424 = vpop.f32.mrb[0].mxu0
        %v1425 = vadd.f32 %v1075, %v1424
        %v1426 = vpop.f32.mrb[0].mxu0
        %v1427 = vadd.f32 %v1071, %v1426
        %v1428 = vpop.f32.mrb[0].mxu0
        %v1429 = vadd.f32 %v1075, %v1428
        %1430 = vdwg.mxu0
        %v1431 = vmax.f32 %v1273, 0.0
        %v1432 = vmax.f32 %v1275, 0.0
        %v1433 = vmax.f32 %v1277, 0.0
        %v1434 = vmax.f32 %v1279, 0.0
        %v1435 = vmax.f32 %v1283, 0.0
        %v1436 = vmax.f32 %v1285, 0.0
        %v1437 = vmax.f32 %v1287, 0.0
        %v1438 = vmax.f32 %v1289, 0.0
        %v1439 = vmax.f32 %v1293, 0.0
        %v1440 = vmax.f32 %v1295, 0.0
        %v1441 = vmax.f32 %v1297, 0.0
        %v1442 = vmax.f32 %v1299, 0.0
        %v1443 = vmax.f32 %v1303, 0.0
        %v1444 = vmax.f32 %v1305, 0.0
        %v1445 = vmax.f32 %v1307, 0.0
        %v1446 = vmax.f32 %v1309, 0.0
        %v1447 = vmax.f32 %v1313, 0.0
        %v1448 = vmax.f32 %v1315, 0.0
        %v1449 = vmax.f32 %v1317, 0.0
        %v1450 = vmax.f32 %v1319, 0.0
        %v1451 = vmax.f32 %v1323, 0.0
        %v1452 = vmax.f32 %v1325, 0.0
        %v1453 = vmax.f32 %v1327, 0.0
        %v1454 = vmax.f32 %v1329, 0.0
        %v1455 = vmax.f32 %v1333, 0.0
        %v1456 = vmax.f32 %v1335, 0.0
        %v1457 = vmax.f32 %v1337, 0.0
        %v1458 = vmax.f32 %v1339, 0.0
        %v1459 = vmax.f32 %v1343, 0.0
        %v1460 = vmax.f32 %v1345, 0.0
        %v1461 = vmax.f32 %v1347, 0.0
        %v1462 = vmax.f32 %v1349, 0.0
        %v1463 = vmax.f32 %v1353, 0.0
        %v1464 = vmax.f32 %v1355, 0.0
        %v1465 = vmax.f32 %v1357, 0.0
        %v1466 = vmax.f32 %v1359, 0.0
        %v1467 = vmax.f32 %v1363, 0.0
        %v1468 = vmax.f32 %v1365, 0.0
        %v1469 = vmax.f32 %v1367, 0.0
        %v1470 = vmax.f32 %v1369, 0.0
        %v1471 = vmax.f32 %v1373, 0.0
        %v1472 = vmax.f32 %v1375, 0.0
        %v1473 = vmax.f32 %v1377, 0.0
        %v1474 = vmax.f32 %v1379, 0.0
        %v1475 = vmax.f32 %v1383, 0.0
        %v1476 = vmax.f32 %v1385, 0.0
        %v1477 = vmax.f32 %v1387, 0.0
        %v1478 = vmax.f32 %v1389, 0.0
        %v1479 = vmax.f32 %v1393, 0.0
        %v1480 = vmax.f32 %v1395, 0.0
        %v1481 = vmax.f32 %v1397, 0.0
        %v1482 = vmax.f32 %v1399, 0.0
        %v1483 = vmax.f32 %v1403, 0.0
        %v1484 = vmax.f32 %v1405, 0.0
        %v1485 = vmax.f32 %v1407, 0.0
        %v1486 = vmax.f32 %v1409, 0.0
        %v1487 = vmax.f32 %v1413, 0.0
        %v1488 = vmax.f32 %v1415, 0.0
        %v1489 = vmax.f32 %v1417, 0.0
        %v1490 = vmax.f32 %v1419, 0.0
        %v1491 = vmax.f32 %v1423, 0.0
        %v1492 = vmax.f32 %v1425, 0.0
        %v1493 = vmax.f32 %v1427, 0.0
        %v1494 = vmax.f32 %v1429, 0.0
        %v1495 = vpack.c.bf16 %v1433, %v1431
        %v1496 = vpack.c.bf16 %v1434, %v1432
        %v1497 = vpack.c.bf16 %v1437, %v1435
        %v1498 = vpack.c.bf16 %v1438, %v1436
        %v1499 = vpack.c.bf16 %v1441, %v1439
        %v1500 = vpack.c.bf16 %v1442, %v1440
        %v1501 = vpack.c.bf16 %v1445, %v1443
        %v1502 = vpack.c.bf16 %v1446, %v1444
        %v1503 = vpack.c.bf16 %v1449, %v1447
        %v1504 = vpack.c.bf16 %v1450, %v1448
        %v1505 = vpack.c.bf16 %v1453, %v1451
        %v1506 = vpack.c.bf16 %v1454, %v1452
        %v1507 = vpack.c.bf16 %v1457, %v1455
        %v1508 = vpack.c.bf16 %v1458, %v1456
        %v1509 = vpack.c.bf16 %v1461, %v1459
        %v1510 = vpack.c.bf16 %v1462, %v1460
        %v1511 = vpack.c.bf16 %v1465, %v1463
        %v1512 = vpack.c.bf16 %v1466, %v1464
        %v1513 = vpack.c.bf16 %v1469, %v1467
        %v1514 = vpack.c.bf16 %v1470, %v1468
        %v1515 = vpack.c.bf16 %v1473, %v1471
        %v1516 = vpack.c.bf16 %v1474, %v1472
        %v1517 = vpack.c.bf16 %v1477, %v1475
        %v1518 = vpack.c.bf16 %v1478, %v1476
        %v1519 = vpack.c.bf16 %v1481, %v1479
        %v1520 = vpack.c.bf16 %v1482, %v1480
        %v1521 = vpack.c.bf16 %v1485, %v1483
        %v1522 = vpack.c.bf16 %v1486, %v1484
        %v1523 = vpack.c.bf16 %v1489, %v1487
        %v1524 = vpack.c.bf16 %v1490, %v1488
        %v1525 = vpack.c.bf16 %v1493, %v1491
        %v1526 = vpack.c.bf16 %v1494, %v1492
        %v1527 = vld [vmem:[%s6] sm:$0xf]
        %v1528 = vld [vmem:[%s6 + $0x4] sm:$0xf]
        %v1529 = vld [vmem:[%s6 + $0x8] sm:$0xf]
        %v1530 = vld [vmem:[%s6 + $0xc] sm:$0xf]
        %v1531 = vld [vmem:[%s6 + $0x10] sm:$0xf]
        %v1532 = vld [vmem:[%s6 + $0x14] sm:$0xf]
        %v1533 = vld [vmem:[%s6 + $0x18] sm:$0xf]
        %v1534 = vld [vmem:[%s6 + $0x1c] sm:$0xf]
        %v1535 = vld [vmem:[%s6 + $0x20] sm:$0xf]
        %v1536 = vld [vmem:[%s6 + $0x24] sm:$0xf]
        %v1537 = vld [vmem:[%s6 + $0x28] sm:$0xf]
        %v1538 = vld [vmem:[%s6 + $0x2c] sm:$0xf]
        %v1539 = vld [vmem:[%s6 + $0x30] sm:$0xf]
        %v1540 = vld [vmem:[%s6 + $0x34] sm:$0xf]
        %v1541 = vld [vmem:[%s6 + $0x38] sm:$0xf]
        %v1542 = vld [vmem:[%s6 + $0x3c] sm:$0xf]
        %v1543 = vld [vmem:[%s6 + $0x40] sm:$0xf]
        %v1544 = vld [vmem:[%s6 + $0x44] sm:$0xf]
        %v1545 = vld [vmem:[%s6 + $0x48] sm:$0xf]
        %v1546 = vld [vmem:[%s6 + $0x4c] sm:$0xf]
        %v1547 = vld [vmem:[%s6 + $0x50] sm:$0xf]
        %v1548 = vld [vmem:[%s6 + $0x54] sm:$0xf]
        %v1549 = vld [vmem:[%s6 + $0x58] sm:$0xf]
        %v1550 = vld [vmem:[%s6 + $0x5c] sm:$0xf]
        %v1551 = vld [vmem:[%s6 + $0x60] sm:$0xf]
        %v1552 = vld [vmem:[%s6 + $0x64] sm:$0xf]
        %v1553 = vld [vmem:[%s6 + $0x68] sm:$0xf]
        %v1554 = vld [vmem:[%s6 + $0x6c] sm:$0xf]
        %v1555 = vld [vmem:[%s6 + $0x70] sm:$0xf]
        %v1556 = vld [vmem:[%s6 + $0x74] sm:$0xf]
        %v1557 = vld [vmem:[%s6 + $0x78] sm:$0xf]
        %v1558 = vld [vmem:[%s6 + $0x7c] sm:$0xf]
        %v1559 = vld [vmem:[%s7] sm:$0x1]
        %v1561 = vlaneseq
        %v1562 = vshrl.u32 %v1561, 7
        %v1563 = vsub.s32 0, %v1562
        %v1564 = vrot.slane %v1559, %v1563
        %v1598 = vunpack.c.l.b16 %v1527
        %v1599 = vunpack.c.l.b16 %v1528
        %v1600 = vunpack.c.l.b16 %v1529
        %v1601 = vunpack.c.l.b16 %v1530
        %v1602 = vunpack.c.l.b16 %v1531
        %v1603 = vunpack.c.l.b16 %v1532
        %v1604 = vunpack.c.l.b16 %v1533
        %v1605 = vunpack.c.l.b16 %v1534
        %v1606 = vunpack.c.l.b16 %v1535
        %v1607 = vunpack.c.l.b16 %v1536
        %v1608 = vunpack.c.l.b16 %v1537
        %v1609 = vunpack.c.l.b16 %v1538
        %v1610 = vunpack.c.l.b16 %v1539
        %v1611 = vunpack.c.l.b16 %v1540
        %v1612 = vunpack.c.l.b16 %v1541
        %v1613 = vunpack.c.l.b16 %v1542
        %v1614 = vunpack.c.l.b16 %v1543
        %v1615 = vunpack.c.l.b16 %v1544
        %v1616 = vunpack.c.l.b16 %v1545
        %v1617 = vunpack.c.l.b16 %v1546
        %v1618 = vunpack.c.l.b16 %v1547
        %v1619 = vunpack.c.l.b16 %v1548
        %v1620 = vunpack.c.l.b16 %v1549
        %v1621 = vunpack.c.l.b16 %v1550
        %v1622 = vunpack.c.l.b16 %v1551
        %v1623 = vunpack.c.l.b16 %v1552
        %v1624 = vunpack.c.l.b16 %v1553
        %v1625 = vunpack.c.l.b16 %v1554
        %v1626 = vunpack.c.l.b16 %v1555
        %v1627 = vunpack.c.l.b16 %v1556
        %v1628 = vunpack.c.l.b16 %v1557
        %v1629 = vunpack.c.l.b16 %v1558
        %v1630 = vpack.c.b16 %v1599, %v1598
        %v1631 = vpack.c.b16 %v1601, %v1600
        %v1632 = vpack.c.b16 %v1603, %v1602
        %v1633 = vpack.c.b16 %v1605, %v1604
        %v1634 = vpack.c.b16 %v1607, %v1606
        %v1635 = vpack.c.b16 %v1609, %v1608
        %v1636 = vpack.c.b16 %v1611, %v1610
        %v1637 = vpack.c.b16 %v1613, %v1612
        %v1638 = vpack.c.b16 %v1615, %v1614
        %v1639 = vpack.c.b16 %v1617, %v1616
        %v1640 = vpack.c.b16 %v1619, %v1618
        %v1641 = vpack.c.b16 %v1621, %v1620
        %v1642 = vpack.c.b16 %v1623, %v1622
        %v1643 = vpack.c.b16 %v1625, %v1624
        %v1644 = vpack.c.b16 %v1627, %v1626
        %v1645 = vpack.c.b16 %v1629, %v1628
        %1662 = vmatprep.subr.bf16.mxu0 0
        %1663 = vmatpush1.bf16.msra.mxu0 %v1630
        %1664 = vmatprep.subr.bf16.mxu0 0
        %1665 = vmatpush1.bf16.msra.mxu0 %v1631
        %1666 = vmatprep.subr.bf16.mxu0 0
        %1667 = vmatpush1.bf16.msra.mxu0 %v1632
        %1668 = vmatprep.subr.bf16.mxu0 0
        %1669 = vmatpush1.bf16.msra.mxu0 %v1633
        %1670 = vmatprep.subr.bf16.mxu0 0
        %1671 = vmatpush1.bf16.msra.mxu0 %v1634
        %1672 = vmatprep.subr.bf16.mxu0 0
        %1673 = vmatpush1.bf16.msra.mxu0 %v1635
        %1674 = vmatprep.subr.bf16.mxu0 0
        %1675 = vmatpush1.bf16.msra.mxu0 %v1636
        %1676 = vmatprep.subr.bf16.mxu0 0
        %1677 = vmatpush1.bf16.msra.mxu0 %v1637
        %1678 = vmatprep.subr.bf16.mxu0 0
        %1679 = vmatpush1.bf16.msra.mxu0 %v1638
        %1680 = vmatprep.subr.bf16.mxu0 0
        %1681 = vmatpush1.bf16.msra.mxu0 %v1639
        %1682 = vmatprep.subr.bf16.mxu0 0
        %1683 = vmatpush1.bf16.msra.mxu0 %v1640
        %1684 = vmatprep.subr.bf16.mxu0 0
        %1685 = vmatpush1.bf16.msra.mxu0 %v1641
        %1686 = vmatprep.subr.bf16.mxu0 0
        %1687 = vmatpush1.bf16.msra.mxu0 %v1642
        %1688 = vmatprep.subr.bf16.mxu0 0
        %1689 = vmatpush1.bf16.msra.mxu0 %v1643
        %1690 = vmatprep.subr.bf16.mxu0 0
        %1691 = vmatpush1.bf16.msra.mxu0 %v1644
        %1692 = vmatprep.subr.bf16.mxu0 0
        %1693 = vmatpush1.bf16.msra.mxu0 %v1645
        %1694 = vmatprep.mubr.bf16.mxu0 %v1496
        %1695 = vmatmul.mubr.bf16.gmra.mrb[0].mxu0 %v1495
        %v1696 = vpop.f32.mrb[0].mxu0
        %v1697 = vadd.f32 %v1564, %v1696
        %v1698 = vpop.f32.mrb[0].mxu0
        %v1699 = vpop.f32.mrb[0].mxu0
        %v1700 = vadd.f32 %v1564, %v1699
        %v1701 = vpop.f32.mrb[0].mxu0
        %1702 = vmatprep.mubr.bf16.mxu0 %v1498
        %1703 = vmatmul.mubr.bf16.gmra.mrb[0].mxu0 %v1497
        %v1704 = vpop.f32.mrb[0].mxu0
        %v1705 = vadd.f32 %v1564, %v1704
        %v1706 = vpop.f32.mrb[0].mxu0
        %v1707 = vpop.f32.mrb[0].mxu0
        %v1708 = vadd.f32 %v1564, %v1707
        %v1709 = vpop.f32.mrb[0].mxu0
        %1710 = vmatprep.mubr.bf16.mxu0 %v1500
        %1711 = vmatmul.mubr.bf16.gmra.mrb[0].mxu0 %v1499
        %v1712 = vpop.f32.mrb[0].mxu0
        %v1713 = vadd.f32 %v1564, %v1712
        %v1714 = vpop.f32.mrb[0].mxu0
        %v1715 = vpop.f32.mrb[0].mxu0
        %v1716 = vadd.f32 %v1564, %v1715
        %v1717 = vpop.f32.mrb[0].mxu0
        %1718 = vmatprep.mubr.bf16.mxu0 %v1502
        %1719 = vmatmul.mubr.bf16.gmra.mrb[0].mxu0 %v1501
        %v1720 = vpop.f32.mrb[0].mxu0
        %v1721 = vadd.f32 %v1564, %v1720
        %v1722 = vpop.f32.mrb[0].mxu0
        %v1723 = vpop.f32.mrb[0].mxu0
        %v1724 = vadd.f32 %v1564, %v1723
        %v1725 = vpop.f32.mrb[0].mxu0
        %1726 = vmatprep.mubr.bf16.mxu0 %v1504
        %1727 = vmatmul.mubr.bf16.gmra.mrb[0].mxu0 %v1503
        %v1728 = vpop.f32.mrb[0].mxu0
        %v1729 = vadd.f32 %v1564, %v1728
        %v1730 = vpop.f32.mrb[0].mxu0
        %v1731 = vpop.f32.mrb[0].mxu0
        %v1732 = vadd.f32 %v1564, %v1731
        %v1733 = vpop.f32.mrb[0].mxu0
        %1734 = vmatprep.mubr.bf16.mxu0 %v1506
        %1735 = vmatmul.mubr.bf16.gmra.mrb[0].mxu0 %v1505
        %v1736 = vpop.f32.mrb[0].mxu0
        %v1737 = vadd.f32 %v1564, %v1736
        %v1738 = vpop.f32.mrb[0].mxu0
        %v1739 = vpop.f32.mrb[0].mxu0
        %v1740 = vadd.f32 %v1564, %v1739
        %v1741 = vpop.f32.mrb[0].mxu0
        %1742 = vmatprep.mubr.bf16.mxu0 %v1508
        %1743 = vmatmul.mubr.bf16.gmra.mrb[0].mxu0 %v1507
        %v1744 = vpop.f32.mrb[0].mxu0
        %v1745 = vadd.f32 %v1564, %v1744
        %v1746 = vpop.f32.mrb[0].mxu0
        %v1747 = vpop.f32.mrb[0].mxu0
        %v1748 = vadd.f32 %v1564, %v1747
        %v1749 = vpop.f32.mrb[0].mxu0
        %1750 = vmatprep.mubr.bf16.mxu0 %v1510
        %1751 = vmatmul.mubr.bf16.gmra.mrb[0].mxu0 %v1509
        %v1752 = vpop.f32.mrb[0].mxu0
        %v1753 = vadd.f32 %v1564, %v1752
        %v1754 = vpop.f32.mrb[0].mxu0
        %v1755 = vpop.f32.mrb[0].mxu0
        %v1756 = vadd.f32 %v1564, %v1755
        %v1757 = vpop.f32.mrb[0].mxu0
        %1758 = vmatprep.mubr.bf16.mxu0 %v1512
        %1759 = vmatmul.mubr.bf16.gmra.mrb[0].mxu0 %v1511
        %v1760 = vpop.f32.mrb[0].mxu0
        %v1761 = vadd.f32 %v1564, %v1760
        %v1762 = vpop.f32.mrb[0].mxu0
        %v1763 = vpop.f32.mrb[0].mxu0
        %v1764 = vadd.f32 %v1564, %v1763
        %v1765 = vpop.f32.mrb[0].mxu0
        %1766 = vmatprep.mubr.bf16.mxu0 %v1514
        %1767 = vmatmul.mubr.bf16.gmra.mrb[0].mxu0 %v1513
        %v1768 = vpop.f32.mrb[0].mxu0
        %v1769 = vadd.f32 %v1564, %v1768
        %v1770 = vpop.f32.mrb[0].mxu0
        %v1771 = vpop.f32.mrb[0].mxu0
        %v1772 = vadd.f32 %v1564, %v1771
        %v1773 = vpop.f32.mrb[0].mxu0
        %1774 = vmatprep.mubr.bf16.mxu0 %v1516
        %1775 = vmatmul.mubr.bf16.gmra.mrb[0].mxu0 %v1515
        %v1776 = vpop.f32.mrb[0].mxu0
        %v1777 = vadd.f32 %v1564, %v1776
        %v1778 = vpop.f32.mrb[0].mxu0
        %v1779 = vpop.f32.mrb[0].mxu0
        %v1780 = vadd.f32 %v1564, %v1779
        %v1781 = vpop.f32.mrb[0].mxu0
        %1782 = vmatprep.mubr.bf16.mxu0 %v1518
        %1783 = vmatmul.mubr.bf16.gmra.mrb[0].mxu0 %v1517
        %v1784 = vpop.f32.mrb[0].mxu0
        %v1785 = vadd.f32 %v1564, %v1784
        %v1786 = vpop.f32.mrb[0].mxu0
        %v1787 = vpop.f32.mrb[0].mxu0
        %v1788 = vadd.f32 %v1564, %v1787
        %v1789 = vpop.f32.mrb[0].mxu0
        %1790 = vmatprep.mubr.bf16.mxu0 %v1520
        %1791 = vmatmul.mubr.bf16.gmra.mrb[0].mxu0 %v1519
        %v1792 = vpop.f32.mrb[0].mxu0
        %v1793 = vadd.f32 %v1564, %v1792
        %v1794 = vpop.f32.mrb[0].mxu0
        %v1795 = vpop.f32.mrb[0].mxu0
        %v1796 = vadd.f32 %v1564, %v1795
        %v1797 = vpop.f32.mrb[0].mxu0
        %1798 = vmatprep.mubr.bf16.mxu0 %v1522
        %1799 = vmatmul.mubr.bf16.gmra.mrb[0].mxu0 %v1521
        %v1800 = vpop.f32.mrb[0].mxu0
        %v1801 = vadd.f32 %v1564, %v1800
        %v1802 = vpop.f32.mrb[0].mxu0
        %v1803 = vpop.f32.mrb[0].mxu0
        %v1804 = vadd.f32 %v1564, %v1803
        %v1805 = vpop.f32.mrb[0].mxu0
        %1806 = vmatprep.mubr.bf16.mxu0 %v1524
        %1807 = vmatmul.mubr.bf16.gmra.mrb[0].mxu0 %v1523
        %v1808 = vpop.f32.mrb[0].mxu0
        %v1809 = vadd.f32 %v1564, %v1808
        %v1810 = vpop.f32.mrb[0].mxu0
        %v1811 = vpop.f32.mrb[0].mxu0
        %v1812 = vadd.f32 %v1564, %v1811
        %v1813 = vpop.f32.mrb[0].mxu0
        %1814 = vmatprep.mubr.bf16.mxu0 %v1526
        %1815 = vmatmul.mubr.bf16.gmra.mrb[0].mxu0 %v1525
        %v1816 = vpop.f32.mrb[0].mxu0
        %v1817 = vadd.f32 %v1564, %v1816
        %v1818 = vpop.f32.mrb[0].mxu0
        %v1819 = vpop.f32.mrb[0].mxu0
        %v1820 = vadd.f32 %v1564, %v1819
        %v1821 = vpop.f32.mrb[0].mxu0
        %1822 = vdwg.mxu0
        %v1823 = vld [vmem:[%s8] sm:$0xff]
        %v1824 = vld [vmem:[%s8 + $0x8] sm:$0xff]
        %v1825 = vld [vmem:[%s8 + $0x10] sm:$0xff]
        %v1826 = vld [vmem:[%s8 + $0x18] sm:$0xff]
        %v1827 = vld [vmem:[%s8 + $0x20] sm:$0xff]
        %v1828 = vld [vmem:[%s8 + $0x28] sm:$0xff]
        %v1829 = vld [vmem:[%s8 + $0x30] sm:$0xff]
        %v1830 = vld [vmem:[%s8 + $0x38] sm:$0xff]
        %v1831 = vld [vmem:[%s8 + $0x40] sm:$0xff]
        %v1832 = vld [vmem:[%s8 + $0x48] sm:$0xff]
        %v1833 = vld [vmem:[%s8 + $0x50] sm:$0xff]
        %v1834 = vld [vmem:[%s8 + $0x58] sm:$0xff]
        %v1835 = vld [vmem:[%s8 + $0x60] sm:$0xff]
        %v1836 = vld [vmem:[%s8 + $0x68] sm:$0xff]
        %v1837 = vld [vmem:[%s8 + $0x70] sm:$0xff]
        %v1838 = vld [vmem:[%s8 + $0x78] sm:$0xff]
        %v1839 = vld [vmem:[%s8 + $0x80] sm:$0xff]
        %v1840 = vld [vmem:[%s8 + $0x88] sm:$0xff]
        %v1841 = vld [vmem:[%s8 + $0x90] sm:$0xff]
        %v1842 = vld [vmem:[%s8 + $0x98] sm:$0xff]
        %v1843 = vld [vmem:[%s8 + $0xa0] sm:$0xff]
        %v1844 = vld [vmem:[%s8 + $0xa8] sm:$0xff]
        %v1845 = vld [vmem:[%s8 + $0xb0] sm:$0xff]
        %v1846 = vld [vmem:[%s8 + $0xb8] sm:$0xff]
        %v1847 = vld [vmem:[%s8 + $0xc0] sm:$0xff]
        %v1848 = vld [vmem:[%s8 + $0xc8] sm:$0xff]
        %v1849 = vld [vmem:[%s8 + $0xd0] sm:$0xff]
        %v1850 = vld [vmem:[%s8 + $0xd8] sm:$0xff]
        %v1851 = vld [vmem:[%s8 + $0xe0] sm:$0xff]
        %v1852 = vld [vmem:[%s8 + $0xe8] sm:$0xff]
        %v1853 = vld [vmem:[%s8 + $0xf0] sm:$0xff]
        %v1854 = vld [vmem:[%s8 + $0xf8] sm:$0xff]
        %v1855 = vld [vmem:[%s9] sm:$0x3]
        %v1857 = vlaneseq
        %v1858 = vshrl.u32 %v1857, 7
        %v1859 = vsub.s32 0, %v1858
        %v1860 = vrot.slane %v1855, %v1859
        %v1861 = vlaneseq
        %v1862 = vshrl.u32 %v1861, 7
        %v1863 = vsub.s32 1, %v1862
        %v1864 = vrot.slane %v1855, %v1863
        %v1899 = vunpack.c.l.b16 %v1823
        %v1900 = vunpack.c.h.b16 %v1823
        %v1901 = vunpack.c.l.b16 %v1824
        %v1902 = vunpack.c.h.b16 %v1824
        %v1903 = vunpack.c.l.b16 %v1825
        %v1904 = vunpack.c.h.b16 %v1825
        %v1905 = vunpack.c.l.b16 %v1826
        %v1906 = vunpack.c.h.b16 %v1826
        %v1907 = vunpack.c.l.b16 %v1827
        %v1908 = vunpack.c.h.b16 %v1827
        %v1909 = vunpack.c.l.b16 %v1828
        %v1910 = vunpack.c.h.b16 %v1828
        %v1911 = vunpack.c.l.b16 %v1829
        %v1912 = vunpack.c.h.b16 %v1829
        %v1913 = vunpack.c.l.b16 %v1830
        %v1914 = vunpack.c.h.b16 %v1830
        %v1915 = vunpack.c.l.b16 %v1831
        %v1916 = vunpack.c.h.b16 %v1831
        %v1917 = vunpack.c.l.b16 %v1832
        %v1918 = vunpack.c.h.b16 %v1832
        %v1919 = vunpack.c.l.b16 %v1833
        %v1920 = vunpack.c.h.b16 %v1833
        %v1921 = vunpack.c.l.b16 %v1834
        %v1922 = vunpack.c.h.b16 %v1834
        %v1923 = vunpack.c.l.b16 %v1835
        %v1924 = vunpack.c.h.b16 %v1835
        %v1925 = vunpack.c.l.b16 %v1836
        %v1926 = vunpack.c.h.b16 %v1836
        %v1927 = vunpack.c.l.b16 %v1837
        %v1928 = vunpack.c.h.b16 %v1837
        %v1929 = vunpack.c.l.b16 %v1838
        %v1930 = vunpack.c.h.b16 %v1838
        %v1931 = vunpack.c.l.b16 %v1839
        %v1932 = vunpack.c.h.b16 %v1839
        %v1933 = vunpack.c.l.b16 %v1840
        %v1934 = vunpack.c.h.b16 %v1840
        %v1935 = vunpack.c.l.b16 %v1841
        %v1936 = vunpack.c.h.b16 %v1841
        %v1937 = vunpack.c.l.b16 %v1842
        %v1938 = vunpack.c.h.b16 %v1842
        %v1939 = vunpack.c.l.b16 %v1843
        %v1940 = vunpack.c.h.b16 %v1843
        %v1941 = vunpack.c.l.b16 %v1844
        %v1942 = vunpack.c.h.b16 %v1844
        %v1943 = vunpack.c.l.b16 %v1845
        %v1944 = vunpack.c.h.b16 %v1845
        %v1945 = vunpack.c.l.b16 %v1846
        %v1946 = vunpack.c.h.b16 %v1846
        %v1947 = vunpack.c.l.b16 %v1847
        %v1948 = vunpack.c.h.b16 %v1847
        %v1949 = vunpack.c.l.b16 %v1848
        %v1950 = vunpack.c.h.b16 %v1848
        %v1951 = vunpack.c.l.b16 %v1849
        %v1952 = vunpack.c.h.b16 %v1849
        %v1953 = vunpack.c.l.b16 %v1850
        %v1954 = vunpack.c.h.b16 %v1850
        %v1955 = vunpack.c.l.b16 %v1851
        %v1956 = vunpack.c.h.b16 %v1851
        %v1957 = vunpack.c.l.b16 %v1852
        %v1958 = vunpack.c.h.b16 %v1852
        %v1959 = vunpack.c.l.b16 %v1853
        %v1960 = vunpack.c.h.b16 %v1853
        %v1961 = vunpack.c.l.b16 %v1854
        %v1962 = vunpack.c.h.b16 %v1854
        %v1963 = vpack.c.b16 %v1901, %v1899
        %v1964 = vpack.c.b16 %v1902, %v1900
        %v1965 = vpack.c.b16 %v1905, %v1903
        %v1966 = vpack.c.b16 %v1906, %v1904
        %v1967 = vpack.c.b16 %v1909, %v1907
        %v1968 = vpack.c.b16 %v1910, %v1908
        %v1969 = vpack.c.b16 %v1913, %v1911
        %v1970 = vpack.c.b16 %v1914, %v1912
        %v1971 = vpack.c.b16 %v1917, %v1915
        %v1972 = vpack.c.b16 %v1918, %v1916
        %v1973 = vpack.c.b16 %v1921, %v1919
        %v1974 = vpack.c.b16 %v1922, %v1920
        %v1975 = vpack.c.b16 %v1925, %v1923
        %v1976 = vpack.c.b16 %v1926, %v1924
        %v1977 = vpack.c.b16 %v1929, %v1927
        %v1978 = vpack.c.b16 %v1930, %v1928
        %v1979 = vpack.c.b16 %v1933, %v1931
        %v1980 = vpack.c.b16 %v1934, %v1932
        %v1981 = vpack.c.b16 %v1937, %v1935
        %v1982 = vpack.c.b16 %v1938, %v1936
        %v1983 = vpack.c.b16 %v1941, %v1939
        %v1984 = vpack.c.b16 %v1942, %v1940
        %v1985 = vpack.c.b16 %v1945, %v1943
        %v1986 = vpack.c.b16 %v1946, %v1944
        %v1987 = vpack.c.b16 %v1949, %v1947
        %v1988 = vpack.c.b16 %v1950, %v1948
        %v1989 = vpack.c.b16 %v1953, %v1951
        %v1990 = vpack.c.b16 %v1954, %v1952
        %v1991 = vpack.c.b16 %v1957, %v1955
        %v1992 = vpack.c.b16 %v1958, %v1956
        %v1993 = vpack.c.b16 %v1961, %v1959
        %v1994 = vpack.c.b16 %v1962, %v1960
        %2027 = vmatprep.subr.bf16.mxu0 %v1964
        %2028 = vmatpush1.bf16.msra.mxu0 %v1963
        %2029 = vmatprep.subr.bf16.mxu0 %v1966
        %2030 = vmatpush1.bf16.msra.mxu0 %v1965
        %2031 = vmatprep.subr.bf16.mxu0 %v1968
        %2032 = vmatpush1.bf16.msra.mxu0 %v1967
        %2033 = vmatprep.subr.bf16.mxu0 %v1970
        %2034 = vmatpush1.bf16.msra.mxu0 %v1969
        %2035 = vmatprep.subr.bf16.mxu0 %v1972
        %2036 = vmatpush1.bf16.msra.mxu0 %v1971
        %2037 = vmatprep.subr.bf16.mxu0 %v1974
        %2038 = vmatpush1.bf16.msra.mxu0 %v1973
        %2039 = vmatprep.subr.bf16.mxu0 %v1976
        %2040 = vmatpush1.bf16.msra.mxu0 %v1975
        %2041 = vmatprep.subr.bf16.mxu0 %v1978
        %2042 = vmatpush1.bf16.msra.mxu0 %v1977
        %2043 = vmatprep.subr.bf16.mxu0 %v1980
        %2044 = vmatpush1.bf16.msra.mxu0 %v1979
        %2045 = vmatprep.subr.bf16.mxu0 %v1982
        %2046 = vmatpush1.bf16.msra.mxu0 %v1981
        %2047 = vmatprep.subr.bf16.mxu0 %v1984
        %2048 = vmatpush1.bf16.msra.mxu0 %v1983
        %2049 = vmatprep.subr.bf16.mxu0 %v1986
        %2050 = vmatpush1.bf16.msra.mxu0 %v1985
        %2051 = vmatprep.subr.bf16.mxu0 %v1988
        %2052 = vmatpush1.bf16.msra.mxu0 %v1987
        %2053 = vmatprep.subr.bf16.mxu0 %v1990
        %2054 = vmatpush1.bf16.msra.mxu0 %v1989
        %2055 = vmatprep.subr.bf16.mxu0 %v1992
        %2056 = vmatpush1.bf16.msra.mxu0 %v1991
        %2057 = vmatprep.subr.bf16.mxu0 %v1994
        %2058 = vmatpush1.bf16.msra.mxu0 %v1993
        %2059 = vmatprep.mubr.bf16.mxu0 %v1496
        %2060 = vmatmul.mubr.bf16.gmra.mrb[0].mxu0 %v1495
        %v2061 = vpop.f32.mrb[0].mxu0
        %v2062 = vadd.f32 %v1860, %v2061
        %v2063 = vpop.f32.mrb[0].mxu0
        %v2064 = vadd.f32 %v1864, %v2063
        %v2065 = vpop.f32.mrb[0].mxu0
        %v2066 = vadd.f32 %v1860, %v2065
        %v2067 = vpop.f32.mrb[0].mxu0
        %v2068 = vadd.f32 %v1864, %v2067
        %2069 = vmatprep.mubr.bf16.mxu0 %v1498
        %2070 = vmatmul.mubr.bf16.gmra.mrb[0].mxu0 %v1497
        %v2071 = vpop.f32.mrb[0].mxu0
        %v2072 = vadd.f32 %v1860, %v2071
        %v2073 = vpop.f32.mrb[0].mxu0
        %v2074 = vadd.f32 %v1864, %v2073
        %v2075 = vpop.f32.mrb[0].mxu0
        %v2076 = vadd.f32 %v1860, %v2075
        %v2077 = vpop.f32.mrb[0].mxu0
        %v2078 = vadd.f32 %v1864, %v2077
        %2079 = vmatprep.mubr.bf16.mxu0 %v1500
        %2080 = vmatmul.mubr.bf16.gmra.mrb[0].mxu0 %v1499
        %v2081 = vpop.f32.mrb[0].mxu0
        %v2082 = vadd.f32 %v1860, %v2081
        %v2083 = vpop.f32.mrb[0].mxu0
        %v2084 = vadd.f32 %v1864, %v2083
        %v2085 = vpop.f32.mrb[0].mxu0
        %v2086 = vadd.f32 %v1860, %v2085
        %v2087 = vpop.f32.mrb[0].mxu0
        %v2088 = vadd.f32 %v1864, %v2087
        %2089 = vmatprep.mubr.bf16.mxu0 %v1502
        %2090 = vmatmul.mubr.bf16.gmra.mrb[0].mxu0 %v1501
        %v2091 = vpop.f32.mrb[0].mxu0
        %v2092 = vadd.f32 %v1860, %v2091
        %v2093 = vpop.f32.mrb[0].mxu0
        %v2094 = vadd.f32 %v1864, %v2093
        %v2095 = vpop.f32.mrb[0].mxu0
        %v2096 = vadd.f32 %v1860, %v2095
        %v2097 = vpop.f32.mrb[0].mxu0
        %v2098 = vadd.f32 %v1864, %v2097
        %2099 = vmatprep.mubr.bf16.mxu0 %v1504
        %2100 = vmatmul.mubr.bf16.gmra.mrb[0].mxu0 %v1503
        %v2101 = vpop.f32.mrb[0].mxu0
        %v2102 = vadd.f32 %v1860, %v2101
        %v2103 = vpop.f32.mrb[0].mxu0
        %v2104 = vadd.f32 %v1864, %v2103
        %v2105 = vpop.f32.mrb[0].mxu0
        %v2106 = vadd.f32 %v1860, %v2105
        %v2107 = vpop.f32.mrb[0].mxu0
        %v2108 = vadd.f32 %v1864, %v2107
        %2109 = vmatprep.mubr.bf16.mxu0 %v1506
        %2110 = vmatmul.mubr.bf16.gmra.mrb[0].mxu0 %v1505
        %v2111 = vpop.f32.mrb[0].mxu0
        %v2112 = vadd.f32 %v1860, %v2111
        %v2113 = vpop.f32.mrb[0].mxu0
        %v2114 = vadd.f32 %v1864, %v2113
        %v2115 = vpop.f32.mrb[0].mxu0
        %v2116 = vadd.f32 %v1860, %v2115
        %v2117 = vpop.f32.mrb[0].mxu0
        %v2118 = vadd.f32 %v1864, %v2117
        %2119 = vmatprep.mubr.bf16.mxu0 %v1508
        %2120 = vmatmul.mubr.bf16.gmra.mrb[0].mxu0 %v1507
        %v2121 = vpop.f32.mrb[0].mxu0
        %v2122 = vadd.f32 %v1860, %v2121
        %v2123 = vpop.f32.mrb[0].mxu0
        %v2124 = vadd.f32 %v1864, %v2123
        %v2125 = vpop.f32.mrb[0].mxu0
        %v2126 = vadd.f32 %v1860, %v2125
        %v2127 = vpop.f32.mrb[0].mxu0
        %v2128 = vadd.f32 %v1864, %v2127
        %2129 = vmatprep.mubr.bf16.mxu0 %v1510
        %2130 = vmatmul.mubr.bf16.gmra.mrb[0].mxu0 %v1509
        %v2131 = vpop.f32.mrb[0].mxu0
        %v2132 = vadd.f32 %v1860, %v2131
        %v2133 = vpop.f32.mrb[0].mxu0
        %v2134 = vadd.f32 %v1864, %v2133
        %v2135 = vpop.f32.mrb[0].mxu0
        %v2136 = vadd.f32 %v1860, %v2135
        %v2137 = vpop.f32.mrb[0].mxu0
        %v2138 = vadd.f32 %v1864, %v2137
        %2139 = vmatprep.mubr.bf16.mxu0 %v1512
        %2140 = vmatmul.mubr.bf16.gmra.mrb[0].mxu0 %v1511
        %v2141 = vpop.f32.mrb[0].mxu0
        %v2142 = vadd.f32 %v1860, %v2141
        %v2143 = vpop.f32.mrb[0].mxu0
        %v2144 = vadd.f32 %v1864, %v2143
        %v2145 = vpop.f32.mrb[0].mxu0
        %v2146 = vadd.f32 %v1860, %v2145
        %v2147 = vpop.f32.mrb[0].mxu0
        %v2148 = vadd.f32 %v1864, %v2147
        %2149 = vmatprep.mubr.bf16.mxu0 %v1514
        %2150 = vmatmul.mubr.bf16.gmra.mrb[0].mxu0 %v1513
        %v2151 = vpop.f32.mrb[0].mxu0
        %v2152 = vadd.f32 %v1860, %v2151
        %v2153 = vpop.f32.mrb[0].mxu0
        %v2154 = vadd.f32 %v1864, %v2153
        %v2155 = vpop.f32.mrb[0].mxu0
        %v2156 = vadd.f32 %v1860, %v2155
        %v2157 = vpop.f32.mrb[0].mxu0
        %v2158 = vadd.f32 %v1864, %v2157
        %2159 = vmatprep.mubr.bf16.mxu0 %v1516
        %2160 = vmatmul.mubr.bf16.gmra.mrb[0].mxu0 %v1515
        %v2161 = vpop.f32.mrb[0].mxu0
        %v2162 = vadd.f32 %v1860, %v2161
        %v2163 = vpop.f32.mrb[0].mxu0
        %v2164 = vadd.f32 %v1864, %v2163
        %v2165 = vpop.f32.mrb[0].mxu0
        %v2166 = vadd.f32 %v1860, %v2165
        %v2167 = vpop.f32.mrb[0].mxu0
        %v2168 = vadd.f32 %v1864, %v2167
        %2169 = vmatprep.mubr.bf16.mxu0 %v1518
        %2170 = vmatmul.mubr.bf16.gmra.mrb[0].mxu0 %v1517
        %v2171 = vpop.f32.mrb[0].mxu0
        %v2172 = vadd.f32 %v1860, %v2171
        %v2173 = vpop.f32.mrb[0].mxu0
        %v2174 = vadd.f32 %v1864, %v2173
        %v2175 = vpop.f32.mrb[0].mxu0
        %v2176 = vadd.f32 %v1860, %v2175
        %v2177 = vpop.f32.mrb[0].mxu0
        %v2178 = vadd.f32 %v1864, %v2177
        %2179 = vmatprep.mubr.bf16.mxu0 %v1520
        %2180 = vmatmul.mubr.bf16.gmra.mrb[0].mxu0 %v1519
        %v2181 = vpop.f32.mrb[0].mxu0
        %v2182 = vadd.f32 %v1860, %v2181
        %v2183 = vpop.f32.mrb[0].mxu0
        %v2184 = vadd.f32 %v1864, %v2183
        %v2185 = vpop.f32.mrb[0].mxu0
        %v2186 = vadd.f32 %v1860, %v2185
        %v2187 = vpop.f32.mrb[0].mxu0
        %v2188 = vadd.f32 %v1864, %v2187
        %2189 = vmatprep.mubr.bf16.mxu0 %v1522
        %2190 = vmatmul.mubr.bf16.gmra.mrb[0].mxu0 %v1521
        %v2191 = vpop.f32.mrb[0].mxu0
        %v2192 = vadd.f32 %v1860, %v2191
        %v2193 = vpop.f32.mrb[0].mxu0
        %v2194 = vadd.f32 %v1864, %v2193
        %v2195 = vpop.f32.mrb[0].mxu0
        %v2196 = vadd.f32 %v1860, %v2195
        %v2197 = vpop.f32.mrb[0].mxu0
        %v2198 = vadd.f32 %v1864, %v2197
        %2199 = vmatprep.mubr.bf16.mxu0 %v1524
        %2200 = vmatmul.mubr.bf16.gmra.mrb[0].mxu0 %v1523
        %v2201 = vpop.f32.mrb[0].mxu0
        %v2202 = vadd.f32 %v1860, %v2201
        %v2203 = vpop.f32.mrb[0].mxu0
        %v2204 = vadd.f32 %v1864, %v2203
        %v2205 = vpop.f32.mrb[0].mxu0
        %v2206 = vadd.f32 %v1860, %v2205
        %v2207 = vpop.f32.mrb[0].mxu0
        %v2208 = vadd.f32 %v1864, %v2207
        %2209 = vmatprep.mubr.bf16.mxu0 %v1526
        %2210 = vmatmul.mubr.bf16.gmra.mrb[0].mxu0 %v1525
        %v2211 = vpop.f32.mrb[0].mxu0
        %v2212 = vadd.f32 %v1860, %v2211
        %v2213 = vpop.f32.mrb[0].mxu0
        %v2214 = vadd.f32 %v1864, %v2213
        %v2215 = vpop.f32.mrb[0].mxu0
        %v2216 = vadd.f32 %v1860, %v2215
        %v2217 = vpop.f32.mrb[0].mxu0
        %v2218 = vadd.f32 %v1864, %v2217
        %2219 = vdwg.mxu0
        %v2220 = vld [vmem:[%s434] sm:$0xff]
        %v2221 = vld [vmem:[%s434 + $0x8] sm:$0xff]
        %v2222 = vld [vmem:[%s434 + $0x10] sm:$0xff]
        %v2223 = vld [vmem:[%s434 + $0x18] sm:$0xff]
        %v2224 = vld [vmem:[%s434 + $0x20] sm:$0xff]
        %v2225 = vld [vmem:[%s434 + $0x28] sm:$0xff]
        %v2226 = vld [vmem:[%s434 + $0x30] sm:$0xff]
        %v2227 = vld [vmem:[%s434 + $0x38] sm:$0xff]
        %v2228 = vld [vmem:[%s434 + $0x40] sm:$0xff]
        %v2229 = vld [vmem:[%s434 + $0x48] sm:$0xff]
        %v2230 = vld [vmem:[%s434 + $0x50] sm:$0xff]
        %v2231 = vld [vmem:[%s434 + $0x58] sm:$0xff]
        %v2232 = vld [vmem:[%s434 + $0x60] sm:$0xff]
        %v2233 = vld [vmem:[%s434 + $0x68] sm:$0xff]
        %v2234 = vld [vmem:[%s434 + $0x70] sm:$0xff]
        %v2235 = vld [vmem:[%s434 + $0x78] sm:$0xff]
        %v2236 = vld [vmem:[%s434 + $0x80] sm:$0xff]
        %v2237 = vld [vmem:[%s434 + $0x88] sm:$0xff]
        %v2238 = vld [vmem:[%s434 + $0x90] sm:$0xff]
        %v2239 = vld [vmem:[%s434 + $0x98] sm:$0xff]
        %v2240 = vld [vmem:[%s434 + $0xa0] sm:$0xff]
        %v2241 = vld [vmem:[%s434 + $0xa8] sm:$0xff]
        %v2242 = vld [vmem:[%s434 + $0xb0] sm:$0xff]
        %v2243 = vld [vmem:[%s434 + $0xb8] sm:$0xff]
        %v2244 = vld [vmem:[%s434 + $0xc0] sm:$0xff]
        %v2245 = vld [vmem:[%s434 + $0xc8] sm:$0xff]
        %v2246 = vld [vmem:[%s434 + $0xd0] sm:$0xff]
        %v2247 = vld [vmem:[%s434 + $0xd8] sm:$0xff]
        %v2248 = vld [vmem:[%s434 + $0xe0] sm:$0xff]
        %v2249 = vld [vmem:[%s434 + $0xe8] sm:$0xff]
        %v2250 = vld [vmem:[%s434 + $0xf0] sm:$0xff]
        %v2251 = vld [vmem:[%s434 + $0xf8] sm:$0xff]
        %v2252 = vadd.f32 %v2220, %v1697
        %v2253 = vadd.f32 %v2221, %v1700
        %v2254 = vadd.f32 %v2222, %v1705
        %v2255 = vadd.f32 %v2223, %v1708
        %v2256 = vadd.f32 %v2224, %v1713
        %v2257 = vadd.f32 %v2225, %v1716
        %v2258 = vadd.f32 %v2226, %v1721
        %v2259 = vadd.f32 %v2227, %v1724
        %v2260 = vadd.f32 %v2228, %v1729
        %v2261 = vadd.f32 %v2229, %v1732
        %v2262 = vadd.f32 %v2230, %v1737
        %v2263 = vadd.f32 %v2231, %v1740
        %v2264 = vadd.f32 %v2232, %v1745
        %v2265 = vadd.f32 %v2233, %v1748
        %v2266 = vadd.f32 %v2234, %v1753
        %v2267 = vadd.f32 %v2235, %v1756
        %v2268 = vadd.f32 %v2236, %v1761
        %v2269 = vadd.f32 %v2237, %v1764
        %v2270 = vadd.f32 %v2238, %v1769
        %v2271 = vadd.f32 %v2239, %v1772
        %v2272 = vadd.f32 %v2240, %v1777
        %v2273 = vadd.f32 %v2241, %v1780
        %v2274 = vadd.f32 %v2242, %v1785
        %v2275 = vadd.f32 %v2243, %v1788
        %v2276 = vadd.f32 %v2244, %v1793
        %v2277 = vadd.f32 %v2245, %v1796
        %v2278 = vadd.f32 %v2246, %v1801
        %v2279 = vadd.f32 %v2247, %v1804
        %v2280 = vadd.f32 %v2248, %v1809
        %v2281 = vadd.f32 %v2249, %v1812
        %v2282 = vadd.f32 %v2250, %v1817
        %v2283 = vadd.f32 %v2251, %v1820
        %vm2284 = vcmask 23552
        %2285 = vst.msk [vmem:[%s441] sm:$0xff] %vm2284, %v2252
        %2286 = vst.msk [vmem:[%s441 + $0x8] sm:$0xff] %vm2284, %v2253
        %2287 = vst.msk [vmem:[%s441 + $0x10] sm:$0xff] %vm2284, %v2254
        %2288 = vst.msk [vmem:[%s441 + $0x18] sm:$0xff] %vm2284, %v2255
        %2289 = vst.msk [vmem:[%s441 + $0x20] sm:$0xff] %vm2284, %v2256
        %2290 = vst.msk [vmem:[%s441 + $0x28] sm:$0xff] %vm2284, %v2257
        %2291 = vst.msk [vmem:[%s441 + $0x30] sm:$0xff] %vm2284, %v2258
        %2292 = vst.msk [vmem:[%s441 + $0x38] sm:$0xff] %vm2284, %v2259
        %2293 = vst.msk [vmem:[%s441 + $0x40] sm:$0xff] %vm2284, %v2260
        %2294 = vst.msk [vmem:[%s441 + $0x48] sm:$0xff] %vm2284, %v2261
        %2295 = vst.msk [vmem:[%s441 + $0x50] sm:$0xff] %vm2284, %v2262
        %2296 = vst.msk [vmem:[%s441 + $0x58] sm:$0xff] %vm2284, %v2263
        %2297 = vst.msk [vmem:[%s441 + $0x60] sm:$0xff] %vm2284, %v2264
        %2298 = vst.msk [vmem:[%s441 + $0x68] sm:$0xff] %vm2284, %v2265
        %2299 = vst.msk [vmem:[%s441 + $0x70] sm:$0xff] %vm2284, %v2266
        %2300 = vst.msk [vmem:[%s441 + $0x78] sm:$0xff] %vm2284, %v2267
        %2301 = vst.msk [vmem:[%s441 + $0x80] sm:$0xff] %vm2284, %v2268
        %2302 = vst.msk [vmem:[%s441 + $0x88] sm:$0xff] %vm2284, %v2269
        %2303 = vst.msk [vmem:[%s441 + $0x90] sm:$0xff] %vm2284, %v2270
        %2304 = vst.msk [vmem:[%s441 + $0x98] sm:$0xff] %vm2284, %v2271
        %2305 = vst.msk [vmem:[%s441 + $0xa0] sm:$0xff] %vm2284, %v2272
        %2306 = vst.msk [vmem:[%s441 + $0xa8] sm:$0xff] %vm2284, %v2273
        %2307 = vst.msk [vmem:[%s441 + $0xb0] sm:$0xff] %vm2284, %v2274
        %2308 = vst.msk [vmem:[%s441 + $0xb8] sm:$0xff] %vm2284, %v2275
        %2309 = vst.msk [vmem:[%s441 + $0xc0] sm:$0xff] %vm2284, %v2276
        %2310 = vst.msk [vmem:[%s441 + $0xc8] sm:$0xff] %vm2284, %v2277
        %2311 = vst.msk [vmem:[%s441 + $0xd0] sm:$0xff] %vm2284, %v2278
        %2312 = vst.msk [vmem:[%s441 + $0xd8] sm:$0xff] %vm2284, %v2279
        %2313 = vst.msk [vmem:[%s441 + $0xe0] sm:$0xff] %vm2284, %v2280
        %2314 = vst.msk [vmem:[%s441 + $0xe8] sm:$0xff] %vm2284, %v2281
        %2315 = vst.msk [vmem:[%s441 + $0xf0] sm:$0xff] %vm2284, %v2282
        %2316 = vst.msk [vmem:[%s441 + $0xf8] sm:$0xff] %vm2284, %v2283
        %v2317 = vadd.f32 %v445, %v2062
        %v2318 = vadd.f32 %v446, %v2064
        %v2319 = vadd.f32 %v447, %v2066
        %v2320 = vadd.f32 %v448, %v2068
        %v2321 = vadd.f32 %v449, %v2072
        %v2322 = vadd.f32 %v450, %v2074
        %v2323 = vadd.f32 %v451, %v2076
        %v2324 = vadd.f32 %v452, %v2078
        %v2325 = vadd.f32 %v453, %v2082
        %v2326 = vadd.f32 %v454, %v2084
        %v2327 = vadd.f32 %v455, %v2086
        %v2328 = vadd.f32 %v456, %v2088
        %v2329 = vadd.f32 %v457, %v2092
        %v2330 = vadd.f32 %v458, %v2094
        %v2331 = vadd.f32 %v459, %v2096
        %v2332 = vadd.f32 %v460, %v2098
        %v2333 = vadd.f32 %v461, %v2102
        %v2334 = vadd.f32 %v462, %v2104
        %v2335 = vadd.f32 %v463, %v2106
        %v2336 = vadd.f32 %v464, %v2108
        %v2337 = vadd.f32 %v465, %v2112
        %v2338 = vadd.f32 %v466, %v2114
        %v2339 = vadd.f32 %v467, %v2116
        %v2340 = vadd.f32 %v468, %v2118
        %v2341 = vadd.f32 %v469, %v2122
        %v2342 = vadd.f32 %v470, %v2124
        %v2343 = vadd.f32 %v471, %v2126
        %v2344 = vadd.f32 %v472, %v2128
        %v2345 = vadd.f32 %v473, %v2132
        %v2346 = vadd.f32 %v474, %v2134
        %v2347 = vadd.f32 %v475, %v2136
        %v2348 = vadd.f32 %v476, %v2138
        %v2349 = vadd.f32 %v477, %v2142
        %v2350 = vadd.f32 %v478, %v2144
        %v2351 = vadd.f32 %v479, %v2146
        %v2352 = vadd.f32 %v480, %v2148
        %v2353 = vadd.f32 %v481, %v2152
        %v2354 = vadd.f32 %v482, %v2154
        %v2355 = vadd.f32 %v483, %v2156
        %v2356 = vadd.f32 %v484, %v2158
        %v2357 = vadd.f32 %v485, %v2162
        %v2358 = vadd.f32 %v486, %v2164
        %v2359 = vadd.f32 %v487, %v2166
        %v2360 = vadd.f32 %v488, %v2168
        %v2361 = vadd.f32 %v489, %v2172
        %v2362 = vadd.f32 %v490, %v2174
        %v2363 = vadd.f32 %v491, %v2176
        %v2364 = vadd.f32 %v492, %v2178
        %v2365 = vadd.f32 %v493, %v2182
        %v2366 = vadd.f32 %v494, %v2184
        %v2367 = vadd.f32 %v495, %v2186
        %v2368 = vadd.f32 %v496, %v2188
        %v2369 = vadd.f32 %v497, %v2192
        %v2370 = vadd.f32 %v498, %v2194
        %v2371 = vadd.f32 %v499, %v2196
        %v2372 = vadd.f32 %v500, %v2198
        %v2373 = vadd.f32 %v501, %v2202
        %v2374 = vadd.f32 %v502, %v2204
        %v2375 = vadd.f32 %v503, %v2206
        %v2376 = vadd.f32 %v504, %v2208
        %v2377 = vadd.f32 %v505, %v2212
        %v2378 = vadd.f32 %v506, %v2214
        %v2379 = vadd.f32 %v507, %v2216
        %v2380 = vadd.f32 %v508, %v2218
        %v2381 = vmul.f32 %v2317, %v2317
        %v2382 = vmul.f32 %v2318, %v2318
        %v2383 = vmul.f32 %v2319, %v2319
        %v2384 = vmul.f32 %v2320, %v2320
        %v2385 = vmul.f32 %v2321, %v2321
        %v2386 = vmul.f32 %v2322, %v2322
        %v2387 = vmul.f32 %v2323, %v2323
        %v2388 = vmul.f32 %v2324, %v2324
        %v2389 = vmul.f32 %v2325, %v2325
        %v2390 = vmul.f32 %v2326, %v2326
        %v2391 = vmul.f32 %v2327, %v2327
        %v2392 = vmul.f32 %v2328, %v2328
        %v2393 = vmul.f32 %v2329, %v2329
        %v2394 = vmul.f32 %v2330, %v2330
        %v2395 = vmul.f32 %v2331, %v2331
        %v2396 = vmul.f32 %v2332, %v2332
        %v2397 = vmul.f32 %v2333, %v2333
        %v2398 = vmul.f32 %v2334, %v2334
        %v2399 = vmul.f32 %v2335, %v2335
        %v2400 = vmul.f32 %v2336, %v2336
        %v2401 = vmul.f32 %v2337, %v2337
        %v2402 = vmul.f32 %v2338, %v2338
        %v2403 = vmul.f32 %v2339, %v2339
        %v2404 = vmul.f32 %v2340, %v2340
        %v2405 = vmul.f32 %v2341, %v2341
        %v2406 = vmul.f32 %v2342, %v2342
        %v2407 = vmul.f32 %v2343, %v2343
        %v2408 = vmul.f32 %v2344, %v2344
        %v2409 = vmul.f32 %v2345, %v2345
        %v2410 = vmul.f32 %v2346, %v2346
        %v2411 = vmul.f32 %v2347, %v2347
        %v2412 = vmul.f32 %v2348, %v2348
        %v2413 = vmul.f32 %v2349, %v2349
        %v2414 = vmul.f32 %v2350, %v2350
        %v2415 = vmul.f32 %v2351, %v2351
        %v2416 = vmul.f32 %v2352, %v2352
        %v2417 = vmul.f32 %v2353, %v2353
        %v2418 = vmul.f32 %v2354, %v2354
        %v2419 = vmul.f32 %v2355, %v2355
        %v2420 = vmul.f32 %v2356, %v2356
        %v2421 = vmul.f32 %v2357, %v2357
        %v2422 = vmul.f32 %v2358, %v2358
        %v2423 = vmul.f32 %v2359, %v2359
        %v2424 = vmul.f32 %v2360, %v2360
        %v2425 = vmul.f32 %v2361, %v2361
        %v2426 = vmul.f32 %v2362, %v2362
        %v2427 = vmul.f32 %v2363, %v2363
        %v2428 = vmul.f32 %v2364, %v2364
        %v2429 = vmul.f32 %v2365, %v2365
        %v2430 = vmul.f32 %v2366, %v2366
        %v2431 = vmul.f32 %v2367, %v2367
        %v2432 = vmul.f32 %v2368, %v2368
        %v2433 = vmul.f32 %v2369, %v2369
        %v2434 = vmul.f32 %v2370, %v2370
        %v2435 = vmul.f32 %v2371, %v2371
        %v2436 = vmul.f32 %v2372, %v2372
        %v2437 = vmul.f32 %v2373, %v2373
        %v2438 = vmul.f32 %v2374, %v2374
        %v2439 = vmul.f32 %v2375, %v2375
        %v2440 = vmul.f32 %v2376, %v2376
        %v2441 = vmul.f32 %v2377, %v2377
        %v2442 = vmul.f32 %v2378, %v2378
        %v2443 = vmul.f32 %v2379, %v2379
        %v2444 = vmul.f32 %v2380, %v2380
        %v2445 = vadd.f32 %v2381, %v2382
        %2446 = vadd.xlane.f32.xlu0 %v2445
        %v2447 = vpop.xlane.xlu0 %2446
        %v2448 = vadd.f32 %v2383, %v2384
        %2449 = vadd.xlane.f32.xlu0 %v2448
        %v2450 = vpop.xlane.xlu0 %2449
        %v2451 = vadd.f32 %v2385, %v2386
        %2452 = vadd.xlane.f32.xlu0 %v2451
        %v2453 = vpop.xlane.xlu0 %2452
        %v2454 = vadd.f32 %v2387, %v2388
        %2455 = vadd.xlane.f32.xlu0 %v2454
        %v2456 = vpop.xlane.xlu0 %2455
        %v2457 = vadd.f32 %v2389, %v2390
        %2458 = vadd.xlane.f32.xlu0 %v2457
        %v2459 = vpop.xlane.xlu0 %2458
        %v2460 = vadd.f32 %v2391, %v2392
        %2461 = vadd.xlane.f32.xlu0 %v2460
        %v2462 = vpop.xlane.xlu0 %2461
        %v2463 = vadd.f32 %v2393, %v2394
        %2464 = vadd.xlane.f32.xlu0 %v2463
        %v2465 = vpop.xlane.xlu0 %2464
        %v2466 = vadd.f32 %v2395, %v2396
        %2467 = vadd.xlane.f32.xlu0 %v2466
        %v2468 = vpop.xlane.xlu0 %2467
        %v2469 = vadd.f32 %v2397, %v2398
        %2470 = vadd.xlane.f32.xlu0 %v2469
        %v2471 = vpop.xlane.xlu0 %2470
        %v2472 = vadd.f32 %v2399, %v2400
        %2473 = vadd.xlane.f32.xlu0 %v2472
        %v2474 = vpop.xlane.xlu0 %2473
        %v2475 = vadd.f32 %v2401, %v2402
        %2476 = vadd.xlane.f32.xlu0 %v2475
        %v2477 = vpop.xlane.xlu0 %2476
        %v2478 = vadd.f32 %v2403, %v2404
        %2479 = vadd.xlane.f32.xlu0 %v2478
        %v2480 = vpop.xlane.xlu0 %2479
        %v2481 = vadd.f32 %v2405, %v2406
        %2482 = vadd.xlane.f32.xlu0 %v2481
        %v2483 = vpop.xlane.xlu0 %2482
        %v2484 = vadd.f32 %v2407, %v2408
        %2485 = vadd.xlane.f32.xlu0 %v2484
        %v2486 = vpop.xlane.xlu0 %2485
        %v2487 = vadd.f32 %v2409, %v2410
        %2488 = vadd.xlane.f32.xlu0 %v2487
        %v2489 = vpop.xlane.xlu0 %2488
        %v2490 = vadd.f32 %v2411, %v2412
        %2491 = vadd.xlane.f32.xlu0 %v2490
        %v2492 = vpop.xlane.xlu0 %2491
        %v2493 = vadd.f32 %v2413, %v2414
        %2494 = vadd.xlane.f32.xlu0 %v2493
        %v2495 = vpop.xlane.xlu0 %2494
        %v2496 = vadd.f32 %v2415, %v2416
        %2497 = vadd.xlane.f32.xlu0 %v2496
        %v2498 = vpop.xlane.xlu0 %2497
        %v2499 = vadd.f32 %v2417, %v2418
        %2500 = vadd.xlane.f32.xlu0 %v2499
        %v2501 = vpop.xlane.xlu0 %2500
        %v2502 = vadd.f32 %v2419, %v2420
        %2503 = vadd.xlane.f32.xlu0 %v2502
        %v2504 = vpop.xlane.xlu0 %2503
        %v2505 = vadd.f32 %v2421, %v2422
        %2506 = vadd.xlane.f32.xlu0 %v2505
        %v2507 = vpop.xlane.xlu0 %2506
        %v2508 = vadd.f32 %v2423, %v2424
        %2509 = vadd.xlane.f32.xlu0 %v2508
        %v2510 = vpop.xlane.xlu0 %2509
        %v2511 = vadd.f32 %v2425, %v2426
        %2512 = vadd.xlane.f32.xlu0 %v2511
        %v2513 = vpop.xlane.xlu0 %2512
        %v2514 = vadd.f32 %v2427, %v2428
        %2515 = vadd.xlane.f32.xlu0 %v2514
        %v2516 = vpop.xlane.xlu0 %2515
        %v2517 = vadd.f32 %v2429, %v2430
        %2518 = vadd.xlane.f32.xlu0 %v2517
        %v2519 = vpop.xlane.xlu0 %2518
        %v2520 = vadd.f32 %v2431, %v2432
        %2521 = vadd.xlane.f32.xlu0 %v2520
        %v2522 = vpop.xlane.xlu0 %2521
        %v2523 = vadd.f32 %v2433, %v2434
        %2524 = vadd.xlane.f32.xlu0 %v2523
        %v2525 = vpop.xlane.xlu0 %2524
        %v2526 = vadd.f32 %v2435, %v2436
        %2527 = vadd.xlane.f32.xlu0 %v2526
        %v2528 = vpop.xlane.xlu0 %2527
        %v2529 = vadd.f32 %v2437, %v2438
        %2530 = vadd.xlane.f32.xlu0 %v2529
        %v2531 = vpop.xlane.xlu0 %2530
        %v2532 = vadd.f32 %v2439, %v2440
        %2533 = vadd.xlane.f32.xlu0 %v2532
        %v2534 = vpop.xlane.xlu0 %2533
        %v2535 = vadd.f32 %v2441, %v2442
        %2536 = vadd.xlane.f32.xlu0 %v2535
        %v2537 = vpop.xlane.xlu0 %2536
        %v2538 = vadd.f32 %v2443, %v2444
        %2539 = vadd.xlane.f32.xlu0 %v2538
        %v2540 = vpop.xlane.xlu0 %2539
        %v2541 = vrsqrt.pop %v2447
        %v2542 = vrsqrt.pop %v2450
        %v2543 = vrsqrt.pop %v2453
        %v2544 = vrsqrt.pop %v2456
        %v2545 = vrsqrt.pop %v2459
        %v2546 = vrsqrt.pop %v2462
        %v2547 = vrsqrt.pop %v2465
        %v2548 = vrsqrt.pop %v2468
        %v2549 = vrsqrt.pop %v2471
        %v2550 = vrsqrt.pop %v2474
        %v2551 = vrsqrt.pop %v2477
        %v2552 = vrsqrt.pop %v2480
        %v2553 = vrsqrt.pop %v2483
        %v2554 = vrsqrt.pop %v2486
        %v2555 = vrsqrt.pop %v2489
        %v2556 = vrsqrt.pop %v2492
        %v2557 = vrsqrt.pop %v2495
        %v2558 = vrsqrt.pop %v2498
        %v2559 = vrsqrt.pop %v2501
        %v2560 = vrsqrt.pop %v2504
        %v2561 = vrsqrt.pop %v2507
        %v2562 = vrsqrt.pop %v2510
        %v2563 = vrsqrt.pop %v2513
        %v2564 = vrsqrt.pop %v2516
        %v2565 = vrsqrt.pop %v2519
        %v2566 = vrsqrt.pop %v2522
        %v2567 = vrsqrt.pop %v2525
        %v2568 = vrsqrt.pop %v2528
        %v2569 = vrsqrt.pop %v2531
        %v2570 = vrsqrt.pop %v2534
        %v2571 = vrsqrt.pop %v2537
        %v2572 = vrsqrt.pop %v2540
        %v2573 = vmul.f32 %v2317, %v2541
        %v2574 = vmul.f32 %v2318, %v2541
        %v2575 = vmul.f32 %v2319, %v2542
        %v2576 = vmul.f32 %v2320, %v2542
        %v2577 = vmul.f32 %v2321, %v2543
        %v2578 = vmul.f32 %v2322, %v2543
        %v2579 = vmul.f32 %v2323, %v2544
        %v2580 = vmul.f32 %v2324, %v2544
        %v2581 = vmul.f32 %v2325, %v2545
        %v2582 = vmul.f32 %v2326, %v2545
        %v2583 = vmul.f32 %v2327, %v2546
        %v2584 = vmul.f32 %v2328, %v2546
        %v2585 = vmul.f32 %v2329, %v2547
        %v2586 = vmul.f32 %v2330, %v2547
        %v2587 = vmul.f32 %v2331, %v2548
        %v2588 = vmul.f32 %v2332, %v2548
        %v2589 = vmul.f32 %v2333, %v2549
        %v2590 = vmul.f32 %v2334, %v2549
        %v2591 = vmul.f32 %v2335, %v2550
        %v2592 = vmul.f32 %v2336, %v2550
        %v2593 = vmul.f32 %v2337, %v2551
        %v2594 = vmul.f32 %v2338, %v2551
        %v2595 = vmul.f32 %v2339, %v2552
        %v2596 = vmul.f32 %v2340, %v2552
        %v2597 = vmul.f32 %v2341, %v2553
        %v2598 = vmul.f32 %v2342, %v2553
        %v2599 = vmul.f32 %v2343, %v2554
        %v2600 = vmul.f32 %v2344, %v2554
        %v2601 = vmul.f32 %v2345, %v2555
        %v2602 = vmul.f32 %v2346, %v2555
        %v2603 = vmul.f32 %v2347, %v2556
        %v2604 = vmul.f32 %v2348, %v2556
        %v2605 = vmul.f32 %v2349, %v2557
        %v2606 = vmul.f32 %v2350, %v2557
        %v2607 = vmul.f32 %v2351, %v2558
        %v2608 = vmul.f32 %v2352, %v2558
        %v2609 = vmul.f32 %v2353, %v2559
        %v2610 = vmul.f32 %v2354, %v2559
        %v2611 = vmul.f32 %v2355, %v2560
        %v2612 = vmul.f32 %v2356, %v2560
        %v2613 = vmul.f32 %v2357, %v2561
        %v2614 = vmul.f32 %v2358, %v2561
        %v2615 = vmul.f32 %v2359, %v2562
        %v2616 = vmul.f32 %v2360, %v2562
        %v2617 = vmul.f32 %v2361, %v2563
        %v2618 = vmul.f32 %v2362, %v2563
        %v2619 = vmul.f32 %v2363, %v2564
        %v2620 = vmul.f32 %v2364, %v2564
        %v2621 = vmul.f32 %v2365, %v2565
        %v2622 = vmul.f32 %v2366, %v2565
        %v2623 = vmul.f32 %v2367, %v2566
        %v2624 = vmul.f32 %v2368, %v2566
        %v2625 = vmul.f32 %v2369, %v2567
        %v2626 = vmul.f32 %v2370, %v2567
        %v2627 = vmul.f32 %v2371, %v2568
        %v2628 = vmul.f32 %v2372, %v2568
        %v2629 = vmul.f32 %v2373, %v2569
        %v2630 = vmul.f32 %v2374, %v2569
        %v2631 = vmul.f32 %v2375, %v2570
        %v2632 = vmul.f32 %v2376, %v2570
        %v2633 = vmul.f32 %v2377, %v2571
        %v2634 = vmul.f32 %v2378, %v2571
        %v2635 = vmul.f32 %v2379, %v2572
        %v2636 = vmul.f32 %v2380, %v2572
        %2637 = vst [vmem:[%s429] sm:$0xff] %v2573
        %2638 = vst [vmem:[%s429 + $0x8] sm:$0xff] %v2574
        %2639 = vst [vmem:[%s429 + $0x10] sm:$0xff] %v2575
        %2640 = vst [vmem:[%s429 + $0x18] sm:$0xff] %v2576
        %2641 = vst [vmem:[%s429 + $0x20] sm:$0xff] %v2577
        %2642 = vst [vmem:[%s429 + $0x28] sm:$0xff] %v2578
        %2643 = vst [vmem:[%s429 + $0x30] sm:$0xff] %v2579
        %2644 = vst [vmem:[%s429 + $0x38] sm:$0xff] %v2580
        %2645 = vst [vmem:[%s429 + $0x40] sm:$0xff] %v2581
        %2646 = vst [vmem:[%s429 + $0x48] sm:$0xff] %v2582
        %2647 = vst [vmem:[%s429 + $0x50] sm:$0xff] %v2583
        %2648 = vst [vmem:[%s429 + $0x58] sm:$0xff] %v2584
        %2649 = vst [vmem:[%s429 + $0x60] sm:$0xff] %v2585
        %2650 = vst [vmem:[%s429 + $0x68] sm:$0xff] %v2586
        %2651 = vst [vmem:[%s429 + $0x70] sm:$0xff] %v2587
        %2652 = vst [vmem:[%s429 + $0x78] sm:$0xff] %v2588
        %2653 = vst [vmem:[%s429 + $0x80] sm:$0xff] %v2589
        %2654 = vst [vmem:[%s429 + $0x88] sm:$0xff] %v2590
        %2655 = vst [vmem:[%s429 + $0x90] sm:$0xff] %v2591
        %2656 = vst [vmem:[%s429 + $0x98] sm:$0xff] %v2592
        %2657 = vst [vmem:[%s429 + $0xa0] sm:$0xff] %v2593
        %2658 = vst [vmem:[%s429 + $0xa8] sm:$0xff] %v2594
        %2659 = vst [vmem:[%s429 + $0xb0] sm:$0xff] %v2595
        %2660 = vst [vmem:[%s429 + $0xb8] sm:$0xff] %v2596
        %2661 = vst [vmem:[%s429 + $0xc0] sm:$0xff] %v2597
        %2662 = vst [vmem:[%s429 + $0xc8] sm:$0xff] %v2598
        %2663 = vst [vmem:[%s429 + $0xd0] sm:$0xff] %v2599
        %2664 = vst [vmem:[%s429 + $0xd8] sm:$0xff] %v2600
        %2665 = vst [vmem:[%s429 + $0xe0] sm:$0xff] %v2601
        %2666 = vst [vmem:[%s429 + $0xe8] sm:$0xff] %v2602
        %2667 = vst [vmem:[%s429 + $0xf0] sm:$0xff] %v2603
        %2668 = vst [vmem:[%s429 + $0xf8] sm:$0xff] %v2604
        %2669 = vst [vmem:[%s429 + $0x100] sm:$0xff] %v2605
        %2670 = vst [vmem:[%s429 + $0x108] sm:$0xff] %v2606
        %2671 = vst [vmem:[%s429 + $0x110] sm:$0xff] %v2607
        %2672 = vst [vmem:[%s429 + $0x118] sm:$0xff] %v2608
        %2673 = vst [vmem:[%s429 + $0x120] sm:$0xff] %v2609
        %2674 = vst [vmem:[%s429 + $0x128] sm:$0xff] %v2610
        %2675 = vst [vmem:[%s429 + $0x130] sm:$0xff] %v2611
        %2676 = vst [vmem:[%s429 + $0x138] sm:$0xff] %v2612
        %2677 = vst [vmem:[%s429 + $0x140] sm:$0xff] %v2613
        %2678 = vst [vmem:[%s429 + $0x148] sm:$0xff] %v2614
        %2679 = vst [vmem:[%s429 + $0x150] sm:$0xff] %v2615
        %2680 = vst [vmem:[%s429 + $0x158] sm:$0xff] %v2616
        %2681 = vst [vmem:[%s429 + $0x160] sm:$0xff] %v2617
        %2682 = vst [vmem:[%s429 + $0x168] sm:$0xff] %v2618
        %2683 = vst [vmem:[%s429 + $0x170] sm:$0xff] %v2619
        %2684 = vst [vmem:[%s429 + $0x178] sm:$0xff] %v2620
        %2685 = vst [vmem:[%s429 + $0x180] sm:$0xff] %v2621
        %2686 = vst [vmem:[%s429 + $0x188] sm:$0xff] %v2622
        %2687 = vst [vmem:[%s429 + $0x190] sm:$0xff] %v2623
        %2688 = vst [vmem:[%s429 + $0x198] sm:$0xff] %v2624
        %2689 = vst [vmem:[%s429 + $0x1a0] sm:$0xff] %v2625
        %2690 = vst [vmem:[%s429 + $0x1a8] sm:$0xff] %v2626
        %2691 = vst [vmem:[%s429 + $0x1b0] sm:$0xff] %v2627
        %2692 = vst [vmem:[%s429 + $0x1b8] sm:$0xff] %v2628
        %2693 = vst [vmem:[%s429 + $0x1c0] sm:$0xff] %v2629
        %2694 = vst [vmem:[%s429 + $0x1c8] sm:$0xff] %v2630
        %2695 = vst [vmem:[%s429 + $0x1d0] sm:$0xff] %v2631
        %2696 = vst [vmem:[%s429 + $0x1d8] sm:$0xff] %v2632
        %2697 = vst [vmem:[%s429 + $0x1e0] sm:$0xff] %v2633
        %2698 = vst [vmem:[%s429 + $0x1e8] sm:$0xff] %v2634
        %2699 = vst [vmem:[%s429 + $0x1f0] sm:$0xff] %v2635
        %2700 = vst [vmem:[%s429 + $0x1f8] sm:$0xff] %v2636
        %s2701 = smul.u32 32, %s29
        %p2702 = scmp.lt.s32.totalorder %s2701, 127
        %s2703 = scalar_select %p2702, %s2701, 127
        %s2704 = smul.addr %s2703, 8
        %s2705 = scalar_lea.vmem %s10, %s2704
        %s2706 = sand.u32 %s283, 1
        %s2707 = scalar_lea.sflag [#allocation4], %s2706
        %s2708 = sand.u32 %s283, 1
        %s2709 = smul.addr %s2708, 512
        %s2710 = scalar_lea.vmem [#allocation5], %s2709
        // Predicated region
        $region65: #{tpu_custom_call.1} parent=59 // pred_check
          %p2711 = pneg %p267
        $region66: #{tpu_custom_call.1} parent=59 // pred_check_branch
          %2713 = sbr.rel (%p2711) target = $region68
        $region67: #{tpu_custom_call.1} parent=59 // pred_region
          %s2714 = smul.u32 32, %s29
        $region68: #{tpu_custom_call.1} parent=59 // pred_fallthru
          _
        // Predicated region
        $region69: #{tpu_custom_call.1} parent=59 // pred_check
          %p2715 = pneg %p293
        $region70: #{tpu_custom_call.1} parent=59 // pred_check_branch
          %2717 = sbr.rel (%p2715) target = $region72
        $region71: #{tpu_custom_call.1} parent=59 // pred_region
          %s2718 = smul.u32 32, %s29
          %s2720 = ssub.s32 8192, 8192
          %2721 = vsyncadd %s2707, %s2720
          %s2722 = smul.addr %s2718, 2
          %s2723 = smul.addr %s2722, 128
          %s2724 = scalar_lea.hbm %s11, %s2723
          %s2725 = sshll.u32 %s2710, 4
          %s2726 = int_to_ptr.vmem [resolvable:$true] %s2725
          %2731 = dma.vmem_to_hbm [thread:$0]  %s2726, 8192, %s2724, %s2707, 256, 256, 16
        $region72: #{tpu_custom_call.1} parent=59 // pred_fallthru
          _
      $region60: #{tpu_custom_call.1} parent=5 // pred_fallthru
        _
      %p2732 = scmp.le.s32.totalorder 2, %s24
      // Predicated region
      $region73: #{tpu_custom_call.1} parent=5 // pred_check
        %p2733 = pneg %p2732
      $region74: #{tpu_custom_call.1} parent=5 // pred_check_branch
        %2735 = sbr.rel (%p2733) target = $region76
      $region75: #{tpu_custom_call.1} parent=5 // pred_region
        %s2736 = ssub.s32 %s24, 2
        // Predicated region
        $region77: #{tpu_custom_call.1} parent=75 // pred_check
          %p2737 = pneg %p273
        $region78: #{tpu_custom_call.1} parent=75 // pred_check_branch
          %2739 = sbr.rel (%p2737) target = $region80
        $region79: #{tpu_custom_call.1} parent=75 // pred_region
          %s2740 = smul.u32 32, %s30
          %p2741 = scmp.lt.s32.totalorder %s2740, 127
          %s2742 = scalar_select %p2741, %s2740, 127
          %s2743 = smul.addr %s2742, 8
          %s2744 = scalar_lea.vmem %s10, %s2743
        $region80: #{tpu_custom_call.1} parent=75 // pred_fallthru
          _
        // Predicated region
        $region81: #{tpu_custom_call.1} parent=75 // pred_check
          %p2745 = pneg %p299
        $region82: #{tpu_custom_call.1} parent=75 // pred_check_branch
          %2747 = sbr.rel (%p2745) target = $region84
        $region83: #{tpu_custom_call.1} parent=75 // pred_region
          %s2748 = sand.u32 %s284, 1
          %s2749 = scalar_lea.sflag [#allocation4], %s2748
          %s2750 = sand.u32 %s284, 1
          %s2751 = smul.addr %s2750, 512
          %s2752 = scalar_lea.vmem [#allocation5], %s2751
          %2753 = dma.done %s2749, 8192
        $region84: #{tpu_custom_call.1} parent=75 // pred_fallthru
          _
      $region76: #{tpu_custom_call.1} parent=5 // pred_fallthru
        _
    $region6: #{tpu_custom_call.1} parent=1 // loop_footer
      %s28 = sadd.s32 1, %s24
    $region7: #{tpu_custom_call.1} parent=1 // loop_footer_branch
      %23 = sbr.rel target = $region3
    $region8: #{tpu_custom_call.1} parent=1 // loop_exit
      _
    %2754 = vsyncpa [#allocation3], 1
    %s2755 = scalar_lea.sflag [#allocation3], 1
    %2756 = vsyncpa %s2755, 1
    %2757 = vsyncpa [#allocation4], 1
    %s2758 = scalar_lea.sflag [#allocation4], 1
    %2759 = vsyncpa %s2758, 1

</llo_original>
